<compile_context>
chip_gen: v7x
topology: tpu7x:2x2x1
jax: 0.10.0
libtpu: 0.0.40
codegen_flags: <defaults>
</compile_context>

<pallas_src>
import functools

import jax
import jax.numpy as jnp
from jax import lax
from jax.experimental import pallas as pl
from jax.experimental.pallas import tpu as pltpu


def _round_up(x, m):
    return ((x + m - 1) // m) * m


def _fit_tile(pref, n_pad):
    for t in (pref, 512, 256, 128):
        if t >= 128 and t % 128 == 0 and n_pad % t == 0:
            return t
    return 128


# ----------------------------------------------------------------------------
# Kernel.  grid = (batch, query_tile, key_tile); key axis innermost ("arbitrary")
# carries the online-softmax state, query axis carries the per-batch x1/k/v scratch.
# All per-batch tensors use channels-on-sublane / spatial-on-lane layout [C, N].
# ----------------------------------------------------------------------------
def _head_kernel(fused_ref, cond_ref,
                 w1_ref, wq_ref, wk_ref, wv_ref, w2_ref, w3_ref,
                 b_ref, gamma_ref,
                 out_ref,
                 x1_sc, k_sc, v_sc, q_sc, m_sc, acc_sc,
                 *, cout, ckp, cvp, tq, tk, n_valid, mask_keys):
    f32 = jnp.float32
    bf16 = jnp.bfloat16
    qi = pl.program_id(1)
    ki = pl.program_id(2)
    nk = pl.num_programs(2)

    # static offsets into the packed bias column (all multiples of 8 rows)
    o_b1 = 0
    o_bq = o_b1 + cout
    o_bk = o_bq + ckp
    o_bv = o_bk + ckp
    o_b2 = o_bv + cvp
    o_b3 = o_b2 + cout

    key_off = pl.multiple_of(ki * tk, tk)

    # --- per-batch precompute, streamed one key tile per step (only on the qi==0 pass) ---
    @pl.when(qi == 0)
    def _():
        x_in = fused_ref[0].astype(bf16)                                      # [Cin, TK]
        x1 = jnp.dot(w1_ref[...], x_in, preferred_element_type=f32) + b_ref[o_b1:o_bq, :]
        x1_sc[:, pl.ds(key_off, tk)] = x1                                     # f32 residual source
        x1b = x1.astype(bf16)
        k = jnp.dot(wk_ref[...], x1b, preferred_element_type=f32) + b_ref[o_bk:o_bv, :]
        v = jnp.dot(wv_ref[...], x1b, preferred_element_type=f32) + b_ref[o_bv:o_b2, :]
        k_sc[:, pl.ds(key_off, tk)] = k.astype(bf16)                          # [CkP, TK]
        v_sc[:, pl.ds(key_off, tk)] = v.astype(bf16)                          # [CvP, TK] (row cout == 1)

    # --- per-query-tile init (first key tile) ---
    @pl.when(ki == 0)
    def _():
        cond = cond_ref[0].astype(bf16)                                       # [Ccond, TQ]
        q = jnp.dot(wq_ref[...], cond, preferred_element_type=f32) + b_ref[o_bq:o_bk, :]
        q_sc[...] = q.astype(bf16)                                            # [CkP, TQ]
        m_sc[...] = jnp.full_like(m_sc, -1e30)
        acc_sc[...] = jnp.zeros_like(acc_sc)

    # --- online-softmax attention for this (query tile, key tile) pair ---
    k_t = k_sc[:, pl.ds(key_off, tk)]                                         # [CkP, TK] bf16
    v_t = v_sc[:, pl.ds(key_off, tk)]                                         # [CvP, TK] bf16
    # energy[j, i] = <k[:, j], q[:, i]>  (contract dim 0 of both: no transpose materialized)
    energy = lax.dot_general(k_t, q_sc[...], (((0,), (0,)), ((), ())),
                             preferred_element_type=f32)                      # [TK, TQ] f32
    if mask_keys:
        key_idx = key_off + lax.broadcasted_iota(jnp.int32, (tk, tq), 0)
        energy = jnp.where(key_idx < n_valid, energy, -1e30)
    m_tile = jnp.max(energy, axis=0, keepdims=True)                           # [1, TQ]
    m_new = jnp.maximum(m_sc[...], m_tile)
    alpha = jnp.exp(m_sc[...] - m_new)                                        # [1, TQ]
    # NOTE: on v6e/v7x this exp could be done in bf16 if EUP-bound; kept f32 for v5e portability.
    p = jnp.exp(energy - m_new).astype(bf16)                                  # [TK, TQ] bf16
    # pv[c, i] = sum_j v[c, j] * p[j, i]; the all-ones value row accumulates the softmax row-sum.
    acc_sc[...] = alpha * acc_sc[...] + jnp.dot(v_t, p, preferred_element_type=f32)
    m_sc[...] = m_new

    # --- finalize: normalize, residual, relu -> conv2 -> relu -> conv3 -> relu ---
    @pl.when(ki == nk - 1)
    def _():
        inv_l = pl.reciprocal(acc_sc[cout:cout + 1, :])                       # exact; [1, TQ] is cheap
        attn = acc_sc[:cout, :] * inv_l                                       # [Cout, TQ]
        x1q = x1_sc[:, pl.ds(pl.multiple_of(qi * tq, tq), tq)]                # [Cout, TQ] residual
        x = gamma_ref[0] * attn + x1q
        x = jnp.maximum(x, 0.0)
        x = jnp.dot(w2_ref[...], x.astype(bf16), preferred_element_type=f32) + b_ref[o_b2:o_b3, :]
        x = jnp.maximum(x, 0.0)
        x = jnp.dot(w3_ref[...], x.astype(bf16), preferred_element_type=f32) + b_ref[o_b3:o_b3 + cout, :]
        x = jnp.maximum(x, 0.0)
        out_ref[0] = x.astype(out_ref.dtype)


# ----------------------------------------------------------------------------
# Wrapper: NCHW glue (reshape + optional spatial padding), weight prep, pallas_call.
# ----------------------------------------------------------------------------
@functools.partial(jax.jit, static_argnames=("tq", "tk"))
def concat_head_with_cross_attention(fused_nchw, cond_nchw, params, *, tq=128, tk=128):
    B, Cin, H, W = fused_nchw.shape
    Ccond = cond_nchw.shape[1]
    N = H * W
    Cout = params["w1"].shape[0]
    Ck = params["wq"].shape[0]
    CkP = _round_up(max(Ck, 1), 16)       # pad q/k channels to bf16 sublane tile
    CvP = _round_up(Cout + 1, 16)         # value rows + ones row, bf16 sublane aligned
    f32, bf16 = jnp.float32, jnp.bfloat16

    # pad spatial axis to a multiple of 128 (lane-dense tiles); query padding is sliced
    # off at the end, key padding is masked to -1e30 in-kernel before the softmax.
    N_pad = _round_up(N, 128)
    TQ = _fit_tile(tq, N_pad)             # raise to 256-512 on v6e/v5e when N allows
    TK = _fit_tile(tk, N_pad)
    NQ, NK = N_pad // TQ, N_pad // TK

    fused = fused_nchw.reshape(B, Cin, N)
    cond = cond_nchw.reshape(B, Ccond, N)
    if N_pad != N:
        pad = ((0, 0), (0, 0), (0, N_pad - N))
        fused = jnp.pad(fused, pad)
        cond = jnp.pad(cond, pad)

    # ---- weight prep: bf16 MXU operands, zero-padded q/k channels, ones-row value,
    #      and all six biases packed into a single f32 column (one tiny DMA). ----
    w1 = params["w1"].astype(bf16)
    w2 = params["w2"].astype(bf16)
    w3 = params["w3"].astype(bf16)
    wq = jnp.zeros((CkP, Ccond), bf16).at[:Ck].set(params["wq"].astype(bf16))
    wk = jnp.zeros((CkP, Cout), bf16).at[:Ck].set(params["wk"].astype(bf16))
    wv = jnp.zeros((CvP, Cout), bf16).at[:Cout].set(params["wv"].astype(bf16))
    b_pack = jnp.concatenate([
        params["b1"].astype(f32),
        jnp.zeros((CkP,), f32).at[:Ck].set(params["bq"].astype(f32)),
        jnp.zeros((CkP,), f32).at[:Ck].set(params["bk"].astype(f32)),
        jnp.zeros((CvP,), f32).at[:Cout].set(params["bv"].astype(f32)).at[Cout].set(1.0),
        params["b2"].astype(f32),
        params["b3"].astype(f32),
    ])[:, None]
    gamma = params["gamma"].astype(f32)

    const2d = lambda arr: pl.BlockSpec(arr.shape, lambda b, q, k: (0, 0))

    grid_spec = pltpu.PrefetchScalarGridSpec(
        num_scalar_prefetch=0,
        grid=(B, NQ, NK),
        in_specs=[
            # fused features: one key tile, consumed only on the qi==0 pass.  For qi>0
            # the block index is clamped so consecutive steps repeat the same index and
            # the pipeline elides the copy -> fused is read from HBM once per batch and
            # never double-buffered at full spatial size.
            pl.BlockSpec((1, Cin, TK), lambda b, q, k: (b, 0, jnp.where(q == 0, k, 0))),
            pl.BlockSpec((1, Ccond, TQ), lambda b, q, k: (b, 0, q)),
            const2d(w1), const2d(wq), const2d(wk), const2d(wv), const2d(w2), const2d(w3),
            const2d(b_pack),
            pl.BlockSpec(memory_space=pltpu.MemorySpace.SMEM),   # gamma (scalar)
        ],
        out_specs=pl.BlockSpec((1, Cout, TQ), lambda b, q, k: (b, 0, q)),
        scratch_shapes=[
            pltpu.VMEM((Cout, N_pad), f32),   # x1 (conv1 output, residual source)
            pltpu.VMEM((CkP, N_pad), bf16),   # key projection (bf16 to halve residency)
            pltpu.VMEM((CvP, N_pad), bf16),   # value projection + all-ones row-sum row
            pltpu.VMEM((CkP, TQ), bf16),      # q for the current query tile
            pltpu.VMEM((1, TQ), f32),         # running max
            pltpu.VMEM((CvP, TQ), f32),       # running unnormalized output | row-sum
        ],
    )

    kernel = functools.partial(
        _head_kernel, cout=Cout, ckp=CkP, cvp=CvP, tq=TQ, tk=TK,
        n_valid=N, mask_keys=(N_pad != N))

    out = pl.pallas_call(
        kernel,
        out_shape=jax.ShapeDtypeStruct((B, Cout, N_pad), fused_nchw.dtype),
        grid_spec=grid_spec,
        compiler_params=pltpu.CompilerParams(
            # scratch is carried across the query and key axes -> only batch is parallel.
            # On v7x use pltpu.CORE_PARALLEL on the batch axis for the 2 TensorCores.
            dimension_semantics=("parallel", "arbitrary", "arbitrary"),
            vmem_limit_bytes=56 * 1024 * 1024,   # stays under v7x's 64 MiB physical VMEM
        ),
    )(fused, cond, w1, wq, wk, wv, w2, w3, b_pack, gamma)

    return out[:, :, :N].reshape(B, Cout, H, W)


# ----------------------------------------------------------------------------
# Pure-JAX reference (mirrors the PyTorch module exactly) for verification.
# ----------------------------------------------------------------------------
def _reference(fused_nchw, cond_nchw, p):
    B, Cin, H, W = fused_nchw.shape
    N = H * W
    x = fused_nchw.reshape(B, Cin, N)
    c = cond_nchw.reshape(B, -1, N)
    conv = lambda w, bb, t: jnp.einsum("oi,bin->bon", w, t) + bb[None, :, None]
    x1 = conv(p["w1"], p["b1"], x)
    q = conv(p["wq"], p["bq"], c)
    k = conv(p["wk"], p["bk"], x1)
    v = conv(p["wv"], p["bv"], x1)
    energy = jnp.einsum("bci,bcj->bij", q, k)
    attn = jax.nn.softmax(energy, axis=-1)
    out = jnp.einsum("bcj,bij->bci", v, attn)
    y = p["gamma"][0] * out + x1
    y = jax.nn.relu(y)
    y = jax.nn.relu(conv(p["w2"], p["b2"], y))
    y = jax.nn.relu(conv(p["w3"], p["b3"], y))
    return y.reshape(B, -1, H, W)


# ----------------------------------------------------------------------------
# Deterministic parameter init (shapes follow the PyTorch __init__); 1x1-conv weights
# stored as [Cout, Cin], biases as [Cout].  gamma is nonzero so attention is exercised.
# ----------------------------------------------------------------------------
def make_params(in_channels, out_channels, cond_channels, key):
    key_channels = out_channels // 8
    ks = jax.random.split(key, 12)
    w = lambda k, co, ci: jax.random.normal(k, (co, ci), jnp.float32) * 0.1
    b = lambda k, co: jax.random.normal(k, (co,), jnp.float32) * 0.05
    return {
        "w1": w(ks[0], out_channels, in_channels), "b1": b(ks[1], out_channels),
        "wq": w(ks[2], key_channels, cond_channels), "bq": b(ks[3], key_channels),
        "wk": w(ks[4], key_channels, out_channels), "bk": b(ks[5], key_channels),
        "wv": w(ks[6], out_channels, out_channels), "bv": b(ks[7], out_channels),
        "gamma": jnp.array([0.5], dtype=jnp.float32),
        "w2": w(ks[8], out_channels, out_channels), "b2": b(ks[9], out_channels),
        "w3": w(ks[10], out_channels, out_channels), "b3": b(ks[11], out_channels),
    }


if __name__ == "__main__":
    B, H, W = 2, 16, 16                      # N = 256 -> 2 query tiles x 2 key tiles
    in_channels, out_channels, cond_channels = 32, 32, 16

    root = jax.random.PRNGKey(0)
    k_fused, k_cond, k_params, k_f2, k_c2 = jax.random.split(root, 5)

    fused = jax.random.normal(k_fused, (B, in_channels, H, W), jnp.float32)
    cond = jax.random.normal(k_cond, (B, cond_channels, H, W), jnp.float32)
    params = make_params(in_channels, out_channels, cond_channels, k_params)

    out = jax.block_until_ready(concat_head_with_cross_attention(fused, cond, params))
    ref = _reference(fused, cond, params)
    assert out.shape == (B, out_channels, H, W), out.shape
    err = float(jnp.max(jnp.abs(out - ref)))
    # tolerance covers bf16 MXU operands (f32 accumulation) throughout the chain
    assert jnp.allclose(out, ref, atol=3e-2, rtol=3e-2), err

    # non-multiple-of-128 spatial size: exercises query padding + key masking path
    fused2 = jax.random.normal(k_f2, (1, in_channels, 10, 12), jnp.float32)
    cond2 = jax.random.normal(k_c2, (1, cond_channels, 10, 12), jnp.float32)
    out2 = jax.block_until_ready(concat_head_with_cross_attention(fused2, cond2, params))
    ref2 = _reference(fused2, cond2, params)
    err2 = float(jnp.max(jnp.abs(out2 - ref2)))
    assert out2.shape == (1, out_channels, 10, 12), out2.shape
    assert jnp.allclose(out2, ref2, atol=3e-2, rtol=3e-2), err2

    print("KERNEL_OK")
</pallas_src>

<mosaic_0001>
module attributes {stable_mosaic.version = 11 : i64} {
  func.func @_head_kernel(%arg0: i32, %arg1: i32, %arg2: i32, %arg3: memref<1x32x128xf32, #tpu.memory_space<vmem>>, %arg4: memref<1x16x128xf32, #tpu.memory_space<vmem>>, %arg5: memref<32x32xbf16, #tpu.memory_space<vmem>>, %arg6: memref<16x16xbf16, #tpu.memory_space<vmem>>, %arg7: memref<16x32xbf16, #tpu.memory_space<vmem>>, %arg8: memref<48x32xbf16, #tpu.memory_space<vmem>>, %arg9: memref<32x32xbf16, #tpu.memory_space<vmem>>, %arg10: memref<32x32xbf16, #tpu.memory_space<vmem>>, %arg11: memref<176x1xf32, #tpu.memory_space<vmem>>, %arg12: memref<1xf32, #tpu.memory_space<smem>>, %arg13: memref<1x32x128xf32, #tpu.memory_space<vmem>>, %arg14: memref<32x256xf32, #tpu.memory_space<vmem>>, %arg15: memref<16x256xbf16, #tpu.memory_space<vmem>>, %arg16: memref<48x256xbf16, #tpu.memory_space<vmem>>, %arg17: memref<16x128xbf16, #tpu.memory_space<vmem>>, %arg18: memref<1x128xf32, #tpu.memory_space<vmem>>, %arg19: memref<48x128xf32, #tpu.memory_space<vmem>>) attributes {dimension_semantics = [#tpu.dimension_semantics<parallel>, #tpu.dimension_semantics<arbitrary>, #tpu.dimension_semantics<arbitrary>], iteration_bounds = array<i64: 2, 2, 2>, scalar_prefetch = 0 : i64, scratch_operands = 6 : i64, tpu.core_type = #tpu.core_type<tc>, window_params = [{transform_indices = @transform_0, window_bounds = array<i64: 1, 32, 128>}, {transform_indices = @transform_1, window_bounds = array<i64: 1, 16, 128>}, {pipeline_mode = #tpu.pipeline_mode<synchronous>, transform_indices = @transform_2, window_bounds = array<i64: 32, 32>}, {pipeline_mode = #tpu.pipeline_mode<synchronous>, transform_indices = @transform_3, window_bounds = array<i64: 16, 16>}, {pipeline_mode = #tpu.pipeline_mode<synchronous>, transform_indices = @transform_4, window_bounds = array<i64: 16, 32>}, {pipeline_mode = #tpu.pipeline_mode<synchronous>, transform_indices = @transform_5, window_bounds = array<i64: 48, 32>}, {pipeline_mode = #tpu.pipeline_mode<synchronous>, transform_indices = @transform_6, window_bounds = array<i64: 32, 32>}, {pipeline_mode = #tpu.pipeline_mode<synchronous>, transform_indices = @transform_7, window_bounds = array<i64: 32, 32>}, {pipeline_mode = #tpu.pipeline_mode<synchronous>, transform_indices = @transform_8, window_bounds = array<i64: 176, 1>}, {transform_indices = @transform_9, window_bounds = array<i64: 1>}, {transform_indices = @transform_10, window_bounds = array<i64: 1, 32, 128>}]} {
    %c128_i32 = arith.constant 128 : i32
    %0 = arith.muli %arg2, %c128_i32 : i32
    %1 = tpu.assume_multiple %0, 128 : i32
    %c0_i32 = arith.constant 0 : i32
    %2 = arith.cmpi eq, %arg1, %c0_i32 : i32
    %3 = arith.extui %2 : i1 to i32
    %c0_i32_0 = arith.constant 0 : i32
    %4 = arith.cmpi ne, %3, %c0_i32_0 : i32
    scf.if %4 {
      %c0_19 = arith.constant 0 : index
      %c0_20 = arith.constant 0 : index
      %c0_21 = arith.constant 0 : index
      %35 = vector.load %arg3[%c0_19, %c0_20, %c0_21] : memref<1x32x128xf32, #tpu.memory_space<vmem>>, vector<1x32x128xf32>
      %36 = vector.shape_cast %35 : vector<1x32x128xf32> to vector<32x128xf32>
      %37 = arith.truncf %36 : vector<32x128xf32> to vector<32x128xbf16>
      %c0_22 = arith.constant 0 : index
      %c0_23 = arith.constant 0 : index
      %38 = vector.load %arg5[%c0_22, %c0_23] : memref<32x32xbf16, #tpu.memory_space<vmem>>, vector<32x32xbf16>
      %cst_24 = arith.constant dense<0.000000e+00> : vector<32x128xf32>
      %39 = tpu.matmul %38, %37, %cst_24 {dimension_numbers = #tpu.dot_dimension_numbers<[1], [0], [0], [1], [0, 0, 1, 1], [], []>} : vector<32x32xbf16>, vector<32x128xbf16>, vector<32x128xf32> -> vector<32x128xf32>
      %c0_25 = arith.constant 0 : index
      %c0_26 = arith.constant 0 : index
      %40 = vector.load %arg11[%c0_25, %c0_26] : memref<176x1xf32, #tpu.memory_space<vmem>>, vector<32x1xf32>
      %41 = vector.broadcast %40 : vector<32x1xf32> to vector<32x128xf32>
      %42 = arith.addf %39, %41 : vector<32x128xf32>
      %c0_27 = arith.constant 0 : index
      %43 = arith.index_cast %1 : i32 to index
      %44 = vector.load %arg14[%c0_27, %43] : memref<32x256xf32, #tpu.memory_space<vmem>>, vector<32x128xf32>
      tpu.vector_store %arg14[%c0_27, %43], %42 {strides = array<i32>} : memref<32x256xf32, #tpu.memory_space<vmem>>, vector<32x128xf32>,
      %45 = arith.truncf %42 : vector<32x128xf32> to vector<32x128xbf16>
      %c0_28 = arith.constant 0 : index
      %c0_29 = arith.constant 0 : index
      %46 = vector.load %arg7[%c0_28, %c0_29] : memref<16x32xbf16, #tpu.memory_space<vmem>>, vector<16x32xbf16>
      %cst_30 = arith.constant dense<0.000000e+00> : vector<16x128xf32>
      %47 = tpu.matmul %46, %45, %cst_30 {dimension_numbers = #tpu.dot_dimension_numbers<[1], [0], [0], [1], [0, 0, 1, 1], [], []>} : vector<16x32xbf16>, vector<32x128xbf16>, vector<16x128xf32> -> vector<16x128xf32>
      %c48 = arith.constant 48 : index
      %c0_31 = arith.constant 0 : index
      %48 = vector.load %arg11[%c48, %c0_31] : memref<176x1xf32, #tpu.memory_space<vmem>>, vector<16x1xf32>
      %49 = vector.broadcast %48 : vector<16x1xf32> to vector<16x128xf32>
      %50 = arith.addf %47, %49 : vector<16x128xf32>
      %c0_32 = arith.constant 0 : index
      %c0_33 = arith.constant 0 : index
      %51 = vector.load %arg8[%c0_32, %c0_33] : memref<48x32xbf16, #tpu.memory_space<vmem>>, vector<48x32xbf16>
      %cst_34 = arith.constant dense<0.000000e+00> : vector<48x128xf32>
      %52 = tpu.matmul %51, %45, %cst_34 {dimension_numbers = #tpu.dot_dimension_numbers<[1], [0], [0], [1], [0, 0, 1, 1], [], []>} : vector<48x32xbf16>, vector<32x128xbf16>, vector<48x128xf32> -> vector<48x128xf32>
      %c64 = arith.constant 64 : index
      %c0_35 = arith.constant 0 : index
      %53 = vector.load %arg11[%c64, %c0_35] : memref<176x1xf32, #tpu.memory_space<vmem>>, vector<48x1xf32>
      %54 = vector.broadcast %53 : vector<48x1xf32> to vector<48x128xf32>
      %55 = arith.addf %52, %54 : vector<48x128xf32>
      %56 = arith.truncf %50 : vector<16x128xf32> to vector<16x128xbf16>
      %c0_36 = arith.constant 0 : index
      %57 = arith.index_cast %1 : i32 to index
      %58 = vector.load %arg15[%c0_36, %57] : memref<16x256xbf16, #tpu.memory_space<vmem>>, vector<16x128xbf16>
      tpu.vector_store %arg15[%c0_36, %57], %56 {strides = array<i32>} : memref<16x256xbf16, #tpu.memory_space<vmem>>, vector<16x128xbf16>,
      %59 = arith.truncf %55 : vector<48x128xf32> to vector<48x128xbf16>
      %c0_37 = arith.constant 0 : index
      %60 = arith.index_cast %1 : i32 to index
      %61 = vector.load %arg16[%c0_37, %60] : memref<48x256xbf16, #tpu.memory_space<vmem>>, vector<48x128xbf16>
      tpu.vector_store %arg16[%c0_37, %60], %59 {strides = array<i32>} : memref<48x256xbf16, #tpu.memory_space<vmem>>, vector<48x128xbf16>,
    } else {
    }
    %c0_i32_1 = arith.constant 0 : i32
    %5 = arith.cmpi eq, %arg2, %c0_i32_1 : i32
    %6 = arith.extui %5 : i1 to i32
    %c0_i32_2 = arith.constant 0 : i32
    %7 = arith.cmpi ne, %6, %c0_i32_2 : i32
    scf.if %7 {
      %c0_19 = arith.constant 0 : index
      %c0_20 = arith.constant 0 : index
      %c0_21 = arith.constant 0 : index
      %35 = vector.load %arg4[%c0_19, %c0_20, %c0_21] : memref<1x16x128xf32, #tpu.memory_space<vmem>>, vector<1x16x128xf32>
      %36 = vector.shape_cast %35 : vector<1x16x128xf32> to vector<16x128xf32>
      %37 = arith.truncf %36 : vector<16x128xf32> to vector<16x128xbf16>
      %c0_22 = arith.constant 0 : index
      %c0_23 = arith.constant 0 : index
      %38 = vector.load %arg6[%c0_22, %c0_23] : memref<16x16xbf16, #tpu.memory_space<vmem>>, vector<16x16xbf16>
      %cst_24 = arith.constant dense<0.000000e+00> : vector<16x128xf32>
      %39 = tpu.matmul %38, %37, %cst_24 {dimension_numbers = #tpu.dot_dimension_numbers<[1], [0], [0], [1], [0, 0, 1, 1], [], []>} : vector<16x16xbf16>, vector<16x128xbf16>, vector<16x128xf32> -> vector<16x128xf32>
      %c32 = arith.constant 32 : index
      %c0_25 = arith.constant 0 : index
      %40 = vector.load %arg11[%c32, %c0_25] : memref<176x1xf32, #tpu.memory_space<vmem>>, vector<16x1xf32>
      %41 = vector.broadcast %40 : vector<16x1xf32> to vector<16x128xf32>
      %42 = arith.addf %39, %41 : vector<16x128xf32>
      %43 = arith.truncf %42 : vector<16x128xf32> to vector<16x128xbf16>
      %c0_26 = arith.constant 0 : index
      %c0_27 = arith.constant 0 : index
      %44 = vector.load %arg17[%c0_26, %c0_27] : memref<16x128xbf16, #tpu.memory_space<vmem>>, vector<16x128xbf16>
      tpu.vector_store %arg17[%c0_26, %c0_27], %43 {strides = array<i32>} : memref<16x128xbf16, #tpu.memory_space<vmem>>, vector<16x128xbf16>,
      %cst_28 = arith.constant -1.000000e+30 : f32
      %45 = vector.broadcast %cst_28 : f32 to vector<1x128xf32>
      %c0_29 = arith.constant 0 : index
      %c0_30 = arith.constant 0 : index
      %46 = vector.load %arg18[%c0_29, %c0_30] : memref<1x128xf32, #tpu.memory_space<vmem>>, vector<1x128xf32>
      tpu.vector_store %arg18[%c0_29, %c0_30], %45 {strides = array<i32>} : memref<1x128xf32, #tpu.memory_space<vmem>>, vector<1x128xf32>,
      %cst_31 = arith.constant 0.000000e+00 : f32
      %47 = vector.broadcast %cst_31 : f32 to vector<48x128xf32>
      %c0_32 = arith.constant 0 : index
      %c0_33 = arith.constant 0 : index
      %48 = vector.load %arg19[%c0_32, %c0_33] : memref<48x128xf32, #tpu.memory_space<vmem>>, vector<48x128xf32>
      tpu.vector_store %arg19[%c0_32, %c0_33], %47 {strides = array<i32>} : memref<48x128xf32, #tpu.memory_space<vmem>>, vector<48x128xf32>,
    } else {
    }
    %c0 = arith.constant 0 : index
    %8 = arith.index_cast %1 : i32 to index
    %9 = vector.load %arg15[%c0, %8] : memref<16x256xbf16, #tpu.memory_space<vmem>>, vector<16x128xbf16>
    %c0_3 = arith.constant 0 : index
    %10 = arith.index_cast %1 : i32 to index
    %11 = vector.load %arg16[%c0_3, %10] : memref<48x256xbf16, #tpu.memory_space<vmem>>, vector<48x128xbf16>
    %c0_4 = arith.constant 0 : index
    %c0_5 = arith.constant 0 : index
    %12 = vector.load %arg17[%c0_4, %c0_5] : memref<16x128xbf16, #tpu.memory_space<vmem>>, vector<16x128xbf16>
    %cst = arith.constant dense<0.000000e+00> : vector<128x128xf32>
    %13 = tpu.matmul %9, %12, %cst {dimension_numbers = #tpu.dot_dimension_numbers<[0], [0], [1], [1], [0, 1, 1, 1], [], []>} : vector<16x128xbf16>, vector<16x128xbf16>, vector<128x128xf32> -> vector<128x128xf32>
    %cst_6 = arith.constant dense<0xFF800000> : vector<128xf32>
    %14 = vector.multi_reduction <maximumf>, %13, %cst_6 [0] : vector<128x128xf32> to vector<128xf32>
    %15 = vector.shape_cast %14 : vector<128xf32> to vector<1x128xf32>
    %c0_7 = arith.constant 0 : index
    %c0_8 = arith.constant 0 : index
    %16 = vector.load %arg18[%c0_7, %c0_8] : memref<1x128xf32, #tpu.memory_space<vmem>>, vector<1x128xf32>
    %17 = arith.maximumf %16, %15 : vector<1x128xf32>
    %c0_9 = arith.constant 0 : index
    %c0_10 = arith.constant 0 : index
    %18 = vector.load %arg18[%c0_9, %c0_10] : memref<1x128xf32, #tpu.memory_space<vmem>>, vector<1x128xf32>
    %19 = arith.subf %18, %17 : vector<1x128xf32>
    %20 = math.exp %19 : vector<1x128xf32>
    %21 = vector.broadcast %17 : vector<1x128xf32> to vector<128x128xf32>
    %22 = arith.subf %13, %21 : vector<128x128xf32>
    %23 = math.exp %22 : vector<128x128xf32>
    %24 = arith.truncf %23 : vector<128x128xf32> to vector<128x128xbf16>
    %c0_11 = arith.constant 0 : index
    %c0_12 = arith.constant 0 : index
    %25 = vector.load %arg19[%c0_11, %c0_12] : memref<48x128xf32, #tpu.memory_space<vmem>>, vector<48x128xf32>
    %26 = vector.broadcast %20 : vector<1x128xf32> to vector<48x128xf32>
    %27 = arith.mulf %26, %25 : vector<48x128xf32>
    %cst_13 = arith.constant dense<0.000000e+00> : vector<48x128xf32>
    %28 = tpu.matmul %11, %24, %cst_13 {dimension_numbers = #tpu.dot_dimension_numbers<[1], [0], [0], [1], [0, 0, 1, 1], [], []>} : vector<48x128xbf16>, vector<128x128xbf16>, vector<48x128xf32> -> vector<48x128xf32>
    %29 = arith.addf %27, %28 : vector<48x128xf32>
    %c0_14 = arith.constant 0 : index
    %c0_15 = arith.constant 0 : index
    %30 = vector.load %arg19[%c0_14, %c0_15] : memref<48x128xf32, #tpu.memory_space<vmem>>, vector<48x128xf32>
    tpu.vector_store %arg19[%c0_14, %c0_15], %29 {strides = array<i32>} : memref<48x128xf32, #tpu.memory_space<vmem>>, vector<48x128xf32>,
    %c0_16 = arith.constant 0 : index
    %c0_17 = arith.constant 0 : index
    %31 = vector.load %arg18[%c0_16, %c0_17] : memref<1x128xf32, #tpu.memory_space<vmem>>, vector<1x128xf32>
    tpu.vector_store %arg18[%c0_16, %c0_17], %17 {strides = array<i32>} : memref<1x128xf32, #tpu.memory_space<vmem>>, vector<1x128xf32>,
    %c1_i32 = arith.constant 1 : i32
    %32 = arith.cmpi eq, %arg2, %c1_i32 : i32
    %33 = arith.extui %32 : i1 to i32
    %c0_i32_18 = arith.constant 0 : i32
    %34 = arith.cmpi ne, %33, %c0_i32_18 : i32
    scf.if %34 {
      %c32 = arith.constant 32 : index
      %c0_19 = arith.constant 0 : index
      %35 = vector.load %arg19[%c32, %c0_19] : memref<48x128xf32, #tpu.memory_space<vmem>>, vector<1x128xf32>
      %36 = tpu.reciprocal %35 : vector<1x128xf32> -> vector<1x128xf32>
      %c0_20 = arith.constant 0 : index
      %c0_21 = arith.constant 0 : index
      %37 = vector.load %arg19[%c0_20, %c0_21] : memref<48x128xf32, #tpu.memory_space<vmem>>, vector<32x128xf32>
      %38 = vector.broadcast %36 : vector<1x128xf32> to vector<32x128xf32>
      %39 = arith.mulf %37, %38 : vector<32x128xf32>
      %c128_i32_22 = arith.constant 128 : i32
      %40 = arith.muli %arg1, %c128_i32_22 : i32
      %41 = tpu.assume_multiple %40, 128 : i32
      %c0_23 = arith.constant 0 : index
      %42 = arith.index_cast %41 : i32 to index
      %43 = vector.load %arg14[%c0_23, %42] : memref<32x256xf32, #tpu.memory_space<vmem>>, vector<32x128xf32>
      %c0_24 = arith.constant 0 : index
      %44 = memref.load %arg12[%c0_24] : memref<1xf32, #tpu.memory_space<smem>>
      %45 = vector.broadcast %44 : f32 to vector<32x128xf32>
      %46 = arith.mulf %45, %39 : vector<32x128xf32>
      %47 = arith.addf %46, %43 : vector<32x128xf32>
      %cst_25 = arith.constant 0.000000e+00 : f32
      %48 = vector.broadcast %cst_25 : f32 to vector<32x128xf32>
      %49 = arith.maximumf %47, %48 : vector<32x128xf32>
      %c0_26 = arith.constant 0 : index
      %c0_27 = arith.constant 0 : index
      %50 = vector.load %arg9[%c0_26, %c0_27] : memref<32x32xbf16, #tpu.memory_space<vmem>>, vector<32x32xbf16>
      %51 = arith.truncf %49 : vector<32x128xf32> to vector<32x128xbf16>
      %cst_28 = arith.constant dense<0.000000e+00> : vector<32x128xf32>
      %52 = tpu.matmul %50, %51, %cst_28 {dimension_numbers = #tpu.dot_dimension_numbers<[1], [0], [0], [1], [0, 0, 1, 1], [], []>} : vector<32x32xbf16>, vector<32x128xbf16>, vector<32x128xf32> -> vector<32x128xf32>
      %c112 = arith.constant 112 : index
      %c0_29 = arith.constant 0 : index
      %53 = vector.load %arg11[%c112, %c0_29] : memref<176x1xf32, #tpu.memory_space<vmem>>, vector<32x1xf32>
      %54 = vector.broadcast %53 : vector<32x1xf32> to vector<32x128xf32>
      %55 = arith.addf %52, %54 : vector<32x128xf32>
      %cst_30 = arith.constant 0.000000e+00 : f32
      %56 = vector.broadcast %cst_30 : f32 to vector<32x128xf32>
      %57 = arith.maximumf %55, %56 : vector<32x128xf32>
      %c0_31 = arith.constant 0 : index
      %c0_32 = arith.constant 0 : index
      %58 = vector.load %arg10[%c0_31, %c0_32] : memref<32x32xbf16, #tpu.memory_space<vmem>>, vector<32x32xbf16>
      %59 = arith.truncf %57 : vector<32x128xf32> to vector<32x128xbf16>
      %cst_33 = arith.constant dense<0.000000e+00> : vector<32x128xf32>
      %60 = tpu.matmul %58, %59, %cst_33 {dimension_numbers = #tpu.dot_dimension_numbers<[1], [0], [0], [1], [0, 0, 1, 1], [], []>} : vector<32x32xbf16>, vector<32x128xbf16>, vector<32x128xf32> -> vector<32x128xf32>
      %c144 = arith.constant 144 : index
      %c0_34 = arith.constant 0 : index
      %61 = vector.load %arg11[%c144, %c0_34] : memref<176x1xf32, #tpu.memory_space<vmem>>, vector<32x1xf32>
      %62 = vector.broadcast %61 : vector<32x1xf32> to vector<32x128xf32>
      %63 = arith.addf %60, %62 : vector<32x128xf32>
      %cst_35 = arith.constant 0.000000e+00 : f32
      %64 = vector.broadcast %cst_35 : f32 to vector<32x128xf32>
      %65 = arith.maximumf %63, %64 : vector<32x128xf32>
      %c0_36 = arith.constant 0 : index
      %c0_37 = arith.constant 0 : index
      %c0_38 = arith.constant 0 : index
      %66 = vector.load %arg13[%c0_36, %c0_37, %c0_38] : memref<1x32x128xf32, #tpu.memory_space<vmem>>, vector<1x32x128xf32>
      %67 = vector.shape_cast %66 : vector<1x32x128xf32> to vector<32x128xf32>
      %68 = vector.shape_cast %65 : vector<32x128xf32> to vector<1x32x128xf32>
      tpu.vector_store %arg13[%c0_36, %c0_37, %c0_38], %68 {strides = array<i32>} : memref<1x32x128xf32, #tpu.memory_space<vmem>>, vector<1x32x128xf32>,
    } else {
    }
    return
  }
  func.func @transform_0(%arg0: i32, %arg1: i32, %arg2: i32) -> (i32, i32, i32) {
    %c0_i32 = arith.constant 0 : i32
    %0 = arith.cmpi eq, %arg1, %c0_i32 : i32
    %c0_i32_0 = arith.constant 0 : i32
    %1 = arith.select %0, %arg2, %c0_i32_0 : i32
    %c0_i32_1 = arith.constant 0 : i32
    %c0_i32_2 = arith.constant 0 : i32
    return %arg0, %c0_i32_1, %1 : i32, i32, i32
  }
  func.func @transform_1(%arg0: i32, %arg1: i32, %arg2: i32) -> (i32, i32, i32) {
    %c0_i32 = arith.constant 0 : i32
    %c0_i32_0 = arith.constant 0 : i32
    return %arg0, %c0_i32, %arg1 : i32, i32, i32
  }
  func.func @transform_2(%arg0: i32, %arg1: i32, %arg2: i32) -> (i32, i32) {
    %c0_i32 = arith.constant 0 : i32
    %c0_i32_0 = arith.constant 0 : i32
    %c0_i32_1 = arith.constant 0 : i32
    return %c0_i32, %c0_i32_0 : i32, i32
  }
  func.func @transform_3(%arg0: i32, %arg1: i32, %arg2: i32) -> (i32, i32) {
    %c0_i32 = arith.constant 0 : i32
    %c0_i32_0 = arith.constant 0 : i32
    %c0_i32_1 = arith.constant 0 : i32
    return %c0_i32, %c0_i32_0 : i32, i32
  }
  func.func @transform_4(%arg0: i32, %arg1: i32, %arg2: i32) -> (i32, i32) {
    %c0_i32 = arith.constant 0 : i32
    %c0_i32_0 = arith.constant 0 : i32
    %c0_i32_1 = arith.constant 0 : i32
    return %c0_i32, %c0_i32_0 : i32, i32
  }
  func.func @transform_5(%arg0: i32, %arg1: i32, %arg2: i32) -> (i32, i32) {
    %c0_i32 = arith.constant 0 : i32
    %c0_i32_0 = arith.constant 0 : i32
    %c0_i32_1 = arith.constant 0 : i32
    return %c0_i32, %c0_i32_0 : i32, i32
  }
  func.func @transform_6(%arg0: i32, %arg1: i32, %arg2: i32) -> (i32, i32) {
    %c0_i32 = arith.constant 0 : i32
    %c0_i32_0 = arith.constant 0 : i32
    %c0_i32_1 = arith.constant 0 : i32
    return %c0_i32, %c0_i32_0 : i32, i32
  }
  func.func @transform_7(%arg0: i32, %arg1: i32, %arg2: i32) -> (i32, i32) {
    %c0_i32 = arith.constant 0 : i32
    %c0_i32_0 = arith.constant 0 : i32
    %c0_i32_1 = arith.constant 0 : i32
    return %c0_i32, %c0_i32_0 : i32, i32
  }
  func.func @transform_8(%arg0: i32, %arg1: i32, %arg2: i32) -> (i32, i32) {
    %c0_i32 = arith.constant 0 : i32
    %c0_i32_0 = arith.constant 0 : i32
    %c0_i32_1 = arith.constant 0 : i32
    return %c0_i32, %c0_i32_0 : i32, i32
  }
  func.func @transform_9(%arg0: i32, %arg1: i32, %arg2: i32) -> i32 {
    %c0_i32 = arith.constant 0 : i32
    %c0_i32_0 = arith.constant 0 : i32
    return %c0_i32 : i32
  }
  func.func @transform_10(%arg0: i32, %arg1: i32, %arg2: i32) -> (i32, i32, i32) {
    %c0_i32 = arith.constant 0 : i32
    %c0_i32_0 = arith.constant 0 : i32
    return %arg0, %c0_i32, %arg1 : i32, i32, i32
  }
}

</mosaic_0001>

<llo_original>
// kernel: concat_head_with_cross_attention.1
$region0: #{concat_head_with_cross_attention.1}
  #allocation0 [shape = 'u32[]', space=smem, size = 0x4, offset = 0x4, fixed_abs, tag = 'smem constant byte address 0x4 - core index']
  #allocation1 [shape = 'u32[144,128]{1,0:T(1,128)}', space=vmem, size = 0x12000, scoped, tag = 'internal scratch']
  #allocation2 [shape = 'f32[32,256]{1,0:T(8,128)}', space=vmem, size = 0x8000, scoped, tag = 'scratch operand']
  #allocation3 [shape = 'bf16[16,256]{1,0:T(16,128)(2,1)}', space=vmem, size = 0x2000, scoped, tag = 'scratch operand']
  #allocation4 [shape = 'bf16[48,256]{1,0:T(16,128)(2,1)}', space=vmem, size = 0x6000, scoped, tag = 'scratch operand']
  #allocation5 [shape = 'bf16[16,128]{1,0:T(16,128)(2,1)}', space=vmem, size = 0x1000, scoped, tag = 'scratch operand']
  #allocation6 [shape = 'f32[1,128]{1,0:T(1,128)}', space=vmem, size = 0x200, scoped, tag = 'scratch operand']
  #allocation7 [shape = 'f32[48,128]{1,0:T(8,128)}', space=vmem, size = 0x6000, scoped, tag = 'scratch operand']
  #allocation8 [shape = 'f32[1]{0:T(128)S(6)}', space=smem, size = 0x200, scoped, tag = 'scoped memory for concat_head_with_cross_attention.1']
  %s0 = inlined_call_operand.vmem [shape: f32[2,32,256], index: 0, kind: input, shape index: {}]
  %s1 = inlined_call_operand.vmem [shape: f32[2,16,256], index: 1, kind: input, shape index: {}]
  %s2 = inlined_call_operand.vmem [shape: bf16[32,32], index: 2, kind: input, shape index: {}]
  %s3 = inlined_call_operand.vmem [shape: bf16[16,16], index: 3, kind: input, shape index: {}]
  %s4 = inlined_call_operand.vmem [shape: bf16[16,32], index: 4, kind: input, shape index: {}]
  %s5 = inlined_call_operand.vmem [shape: bf16[48,32], index: 5, kind: input, shape index: {}]
  %s6 = inlined_call_operand.vmem [shape: bf16[32,32], index: 6, kind: input, shape index: {}]
  %s7 = inlined_call_operand.vmem [shape: bf16[32,32], index: 7, kind: input, shape index: {}]
  %s8 = inlined_call_operand.vmem [shape: f32[176,1], index: 8, kind: input, shape index: {}]
  %s9 = inlined_call_operand.<no memory space> [shape: f32[1], index: 9, kind: input, shape index: {}]
  %s10 = inlined_call_operand.vmem [shape: f32[2,32,256], index: 10, kind: output, shape index: {}]
  %s11 = sld [smem:[#allocation0]]
  $region195: #{concat_head_with_cross_attention.1} parent=0
    _
  %s13 = ssub.s32 1, %s11
  %s14 = scalar_select 0, %s13, %s11
  %15 = sst [smem:[#allocation8]] %s9
  $region1: #{concat_head_with_cross_attention.1} parent=0
    #allocation9 [shape = 'u8[32768]{0}', space=vmem, size = 0x8000, scoped, tag = 'input window, operand 0']
    #allocation10 [shape = 'u8[16384]{0}', space=vmem, size = 0x4000, scoped, tag = 'input window, operand 1']
    #allocation11 [shape = 'u8[32768]{0}', space=vmem, size = 0x8000, scoped, tag = 'output window, operand 0']
    loop: start=0, step=1, limit=10
    $region2: #{concat_head_with_cross_attention.1} parent=1 // loop_pre_header
      _
    $region3: #{concat_head_with_cross_attention.1} parent=1 // loop_header
      %s17 = sphi 0, %s21
      %p18 = scmp.ge.s32.totalorder %s17, 10
      %s24 = sphi 0, %s43
      %s25 = sphi 0, %s39
      %s26 = sphi 0, %s35
      %s27 = sphi 0, %s24
      %s28 = sphi 0, %s25
      %s29 = sphi 0, %s26
      %s30 = sphi 0, %s27
      %s31 = sphi 0, %s28
      %s32 = sphi 0, %s29
      %s52 = sphi 0, %s54
      %s55 = sphi 0, %s52
      %s56 = sphi 0, %s55
      %s72 = sphi 0, %s56
      %s80 = sphi 0, %s82
      %s83 = sphi 0, %s80
      %s84 = sphi 0, %s83
      %s100 = sphi 0, %s84
      %s104 = sphi 0, %s104
      %s106 = sphi 0, %s104
      %s107 = sphi 0, %s106
      %s121 = sphi 0, %s107
      %s125 = sphi 0, %s125
      %s127 = sphi 0, %s125
      %s128 = sphi 0, %s127
      %s142 = sphi 0, %s128
      %s146 = sphi 0, %s146
      %s148 = sphi 0, %s146
      %s149 = sphi 0, %s148
      %s163 = sphi 0, %s149
      %s167 = sphi 0, %s167
      %s169 = sphi 0, %s167
      %s170 = sphi 0, %s169
      %s184 = sphi 0, %s170
      %s188 = sphi 0, %s188
      %s190 = sphi 0, %s188
      %s191 = sphi 0, %s190
      %s205 = sphi 0, %s191
      %s209 = sphi 0, %s209
      %s211 = sphi 0, %s209
      %s212 = sphi 0, %s211
      %s226 = sphi 0, %s212
      %s230 = sphi 0, %s230
      %s232 = sphi 0, %s230
      %s233 = sphi 0, %s232
      %s247 = sphi 0, %s233
      %s251 = sphi 0, %s251
      %s253 = sphi 0, %s251
      %s254 = sphi 0, %s253
      %s268 = sphi 0, %s254
      %s276 = sphi 0, %s278
      %s279 = sphi 0, %s276
      %s280 = sphi 0, %s279
      %s296 = sphi 0, %s280
    $region4: #{concat_head_with_cross_attention.1} parent=1 // loop_header_branch
      %20 = sbr.rel (%p18) target = $region8
    $region5: #{concat_head_with_cross_attention.1} parent=1 // loop_body
      %s22 = ssub.s32 %s17, 1
      %s23 = ssub.s32 %s17, 2
      %s33 = sadd.s32 1, %s26
      %p34 = scmp.ge.s32.totalorder %s33, 2
      %s35 = scalar_select %p34, 0, %s33
      %s36 = sadd.s32 1, %s25
      %s37 = scalar_select %p34, %s36, %s25
      %p38 = scmp.ge.s32.totalorder %s37, 2
      %s39 = scalar_select %p38, 0, %s37
      %s40 = sadd.s32 1, %s24
      %s41 = scalar_select %p38, %s40, %s24
      %p42 = scmp.ge.s32.totalorder %s41, 2
      %s43 = scalar_select %p42, 0, %s41
      %p44 = scmp.eq.s32.totalorder %s25, 0
      %s45 = scalar_select %p44, %s26, 0
      %p46 = scmp.eq.s32.totalorder %s39, 0
      %s47 = scalar_select %p46, %s35, 0
      %s48 = ssub.s32 %s24, %s43
      %s49 = ssub.s32 %s45, %s47
      %s50 = sor.u32 %s48, %s49
      %p51 = scmp.eq.s32.totalorder %s50, 0
      %s53 = sadd.s32 %s52, 1
      %s54 = scalar_select %p51, %s52, %s53
      %p57 = pneg %p51
      %p58 = scmp.eq.s32.totalorder %s17, 7
      %p59 = por %p57, %p58
      %p60 = scmp.ne.s32.totalorder %s52, %s55
      %p61 = scmp.eq.s32.totalorder %s17, 0
      %p62 = por %p60, %p61
      %p63 = scmp.ne.s32.totalorder %s52, %s55
      %p64 = scmp.eq.s32.totalorder %s22, 7
      %p65 = por %p63, %p64
      %p66 = scmp.ne.s32.totalorder %s55, %s56
      %p67 = scmp.eq.s32.totalorder %s22, 0
      %p68 = por %p66, %p67
      %p69 = scmp.ne.s32.totalorder %s55, %s56
      %p70 = scmp.eq.s32.totalorder %s23, 7
      %p71 = por %p69, %p70
      %p73 = scmp.ne.s32.totalorder %s56, %s72
      %p74 = scmp.eq.s32.totalorder %s23, 0
      %p75 = por %p73, %p74
      %s76 = ssub.s32 %s24, %s43
      %s77 = ssub.s32 %s25, %s39
      %s78 = sor.u32 %s76, %s77
      %p79 = scmp.eq.s32.totalorder %s78, 0
      %s81 = sadd.s32 %s80, 1
      %s82 = scalar_select %p79, %s80, %s81
      %p85 = pneg %p79
      %p86 = scmp.eq.s32.totalorder %s17, 7
      %p87 = por %p85, %p86
      %p88 = scmp.ne.s32.totalorder %s80, %s83
      %p89 = scmp.eq.s32.totalorder %s17, 0
      %p90 = por %p88, %p89
      %p91 = scmp.ne.s32.totalorder %s80, %s83
      %p92 = scmp.eq.s32.totalorder %s22, 7
      %p93 = por %p91, %p92
      %p94 = scmp.ne.s32.totalorder %s83, %s84
      %p95 = scmp.eq.s32.totalorder %s22, 0
      %p96 = por %p94, %p95
      %p97 = scmp.ne.s32.totalorder %s83, %s84
      %p98 = scmp.eq.s32.totalorder %s23, 7
      %p99 = por %p97, %p98
      %p101 = scmp.ne.s32.totalorder %s84, %s100
      %p102 = scmp.eq.s32.totalorder %s23, 0
      %p103 = por %p101, %p102
      %s105 = sadd.s32 %s104, 1
      %p108 = scmp.eq.s32.totalorder %s17, 7
      %p109 = scmp.ne.s32.totalorder %s104, %s106
      %p110 = scmp.eq.s32.totalorder %s17, 0
      %p111 = por %p109, %p110
      %p112 = scmp.ne.s32.totalorder %s104, %s106
      %p113 = scmp.eq.s32.totalorder %s22, 7
      %p114 = por %p112, %p113
      %p115 = scmp.ne.s32.totalorder %s106, %s107
      %p116 = scmp.eq.s32.totalorder %s22, 0
      %p117 = por %p115, %p116
      %p118 = scmp.ne.s32.totalorder %s106, %s107
      %p119 = scmp.eq.s32.totalorder %s23, 7
      %p120 = por %p118, %p119
      %p122 = scmp.ne.s32.totalorder %s107, %s121
      %p123 = scmp.eq.s32.totalorder %s23, 0
      %p124 = por %p122, %p123
      %s126 = sadd.s32 %s125, 1
      %p129 = scmp.eq.s32.totalorder %s17, 7
      %p130 = scmp.ne.s32.totalorder %s125, %s127
      %p131 = scmp.eq.s32.totalorder %s17, 0
      %p132 = por %p130, %p131
      %p133 = scmp.ne.s32.totalorder %s125, %s127
      %p134 = scmp.eq.s32.totalorder %s22, 7
      %p135 = por %p133, %p134
      %p136 = scmp.ne.s32.totalorder %s127, %s128
      %p137 = scmp.eq.s32.totalorder %s22, 0
      %p138 = por %p136, %p137
      %p139 = scmp.ne.s32.totalorder %s127, %s128
      %p140 = scmp.eq.s32.totalorder %s23, 7
      %p141 = por %p139, %p140
      %p143 = scmp.ne.s32.totalorder %s128, %s142
      %p144 = scmp.eq.s32.totalorder %s23, 0
      %p145 = por %p143, %p144
      %s147 = sadd.s32 %s146, 1
      %p150 = scmp.eq.s32.totalorder %s17, 7
      %p151 = scmp.ne.s32.totalorder %s146, %s148
      %p152 = scmp.eq.s32.totalorder %s17, 0
      %p153 = por %p151, %p152
      %p154 = scmp.ne.s32.totalorder %s146, %s148
      %p155 = scmp.eq.s32.totalorder %s22, 7
      %p156 = por %p154, %p155
      %p157 = scmp.ne.s32.totalorder %s148, %s149
      %p158 = scmp.eq.s32.totalorder %s22, 0
      %p159 = por %p157, %p158
      %p160 = scmp.ne.s32.totalorder %s148, %s149
      %p161 = scmp.eq.s32.totalorder %s23, 7
      %p162 = por %p160, %p161
      %p164 = scmp.ne.s32.totalorder %s149, %s163
      %p165 = scmp.eq.s32.totalorder %s23, 0
      %p166 = por %p164, %p165
      %s168 = sadd.s32 %s167, 1
      %p171 = scmp.eq.s32.totalorder %s17, 7
      %p172 = scmp.ne.s32.totalorder %s167, %s169
      %p173 = scmp.eq.s32.totalorder %s17, 0
      %p174 = por %p172, %p173
      %p175 = scmp.ne.s32.totalorder %s167, %s169
      %p176 = scmp.eq.s32.totalorder %s22, 7
      %p177 = por %p175, %p176
      %p178 = scmp.ne.s32.totalorder %s169, %s170
      %p179 = scmp.eq.s32.totalorder %s22, 0
      %p180 = por %p178, %p179
      %p181 = scmp.ne.s32.totalorder %s169, %s170
      %p182 = scmp.eq.s32.totalorder %s23, 7
      %p183 = por %p181, %p182
      %p185 = scmp.ne.s32.totalorder %s170, %s184
      %p186 = scmp.eq.s32.totalorder %s23, 0
      %p187 = por %p185, %p186
      %s189 = sadd.s32 %s188, 1
      %p192 = scmp.eq.s32.totalorder %s17, 7
      %p193 = scmp.ne.s32.totalorder %s188, %s190
      %p194 = scmp.eq.s32.totalorder %s17, 0
      %p195 = por %p193, %p194
      %p196 = scmp.ne.s32.totalorder %s188, %s190
      %p197 = scmp.eq.s32.totalorder %s22, 7
      %p198 = por %p196, %p197
      %p199 = scmp.ne.s32.totalorder %s190, %s191
      %p200 = scmp.eq.s32.totalorder %s22, 0
      %p201 = por %p199, %p200
      %p202 = scmp.ne.s32.totalorder %s190, %s191
      %p203 = scmp.eq.s32.totalorder %s23, 7
      %p204 = por %p202, %p203
      %p206 = scmp.ne.s32.totalorder %s191, %s205
      %p207 = scmp.eq.s32.totalorder %s23, 0
      %p208 = por %p206, %p207
      %s210 = sadd.s32 %s209, 1
      %p213 = scmp.eq.s32.totalorder %s17, 7
      %p214 = scmp.ne.s32.totalorder %s209, %s211
      %p215 = scmp.eq.s32.totalorder %s17, 0
      %p216 = por %p214, %p215
      %p217 = scmp.ne.s32.totalorder %s209, %s211
      %p218 = scmp.eq.s32.totalorder %s22, 7
      %p219 = por %p217, %p218
      %p220 = scmp.ne.s32.totalorder %s211, %s212
      %p221 = scmp.eq.s32.totalorder %s22, 0
      %p222 = por %p220, %p221
      %p223 = scmp.ne.s32.totalorder %s211, %s212
      %p224 = scmp.eq.s32.totalorder %s23, 7
      %p225 = por %p223, %p224
      %p227 = scmp.ne.s32.totalorder %s212, %s226
      %p228 = scmp.eq.s32.totalorder %s23, 0
      %p229 = por %p227, %p228
      %s231 = sadd.s32 %s230, 1
      %p234 = scmp.eq.s32.totalorder %s17, 7
      %p235 = scmp.ne.s32.totalorder %s230, %s232
      %p236 = scmp.eq.s32.totalorder %s17, 0
      %p237 = por %p235, %p236
      %p238 = scmp.ne.s32.totalorder %s230, %s232
      %p239 = scmp.eq.s32.totalorder %s22, 7
      %p240 = por %p238, %p239
      %p241 = scmp.ne.s32.totalorder %s232, %s233
      %p242 = scmp.eq.s32.totalorder %s22, 0
      %p243 = por %p241, %p242
      %p244 = scmp.ne.s32.totalorder %s232, %s233
      %p245 = scmp.eq.s32.totalorder %s23, 7
      %p246 = por %p244, %p245
      %p248 = scmp.ne.s32.totalorder %s233, %s247
      %p249 = scmp.eq.s32.totalorder %s23, 0
      %p250 = por %p248, %p249
      %s252 = sadd.s32 %s251, 1
      %p255 = scmp.eq.s32.totalorder %s17, 7
      %p256 = scmp.ne.s32.totalorder %s251, %s253
      %p257 = scmp.eq.s32.totalorder %s17, 0
      %p258 = por %p256, %p257
      %p259 = scmp.ne.s32.totalorder %s251, %s253
      %p260 = scmp.eq.s32.totalorder %s22, 7
      %p261 = por %p259, %p260
      %p262 = scmp.ne.s32.totalorder %s253, %s254
      %p263 = scmp.eq.s32.totalorder %s22, 0
      %p264 = por %p262, %p263
      %p265 = scmp.ne.s32.totalorder %s253, %s254
      %p266 = scmp.eq.s32.totalorder %s23, 7
      %p267 = por %p265, %p266
      %p269 = scmp.ne.s32.totalorder %s254, %s268
      %p270 = scmp.eq.s32.totalorder %s23, 0
      %p271 = por %p269, %p270
      %s272 = ssub.s32 %s24, %s43
      %s273 = ssub.s32 %s25, %s39
      %s274 = sor.u32 %s272, %s273
      %p275 = scmp.eq.s32.totalorder %s274, 0
      %s277 = sadd.s32 %s276, 1
      %s278 = scalar_select %p275, %s276, %s277
      %p281 = pneg %p275
      %p282 = scmp.eq.s32.totalorder %s17, 7
      %p283 = por %p281, %p282
      %p284 = scmp.ne.s32.totalorder %s276, %s279
      %p285 = scmp.eq.s32.totalorder %s17, 0
      %p286 = por %p284, %p285
      %p287 = scmp.ne.s32.totalorder %s276, %s279
      %p288 = scmp.eq.s32.totalorder %s22, 7
      %p289 = por %p287, %p288
      %p290 = scmp.ne.s32.totalorder %s279, %s280
      %p291 = scmp.eq.s32.totalorder %s22, 0
      %p292 = por %p290, %p291
      %p293 = scmp.ne.s32.totalorder %s279, %s280
      %p294 = scmp.eq.s32.totalorder %s23, 7
      %p295 = por %p293, %p294
      %p297 = scmp.ne.s32.totalorder %s280, %s296
      %p298 = scmp.eq.s32.totalorder %s23, 0
      %p299 = por %p297, %p298
      %p300 = scmp.le.s32.totalorder 1, %s17
      %p301 = scmp.lt.s32.totalorder %s17, 9
      %p302 = pnand %p300, %p301
      %p303 = pneg %p302
      // Predicated region
      $region9: #{concat_head_with_cross_attention.1} parent=5 // pred_check
        _
      $region10: #{concat_head_with_cross_attention.1} parent=5 // pred_check_branch
        %305 = sbr.rel (%p302) target = $region12
      $region11: #{concat_head_with_cross_attention.1} parent=5 // pred_region
        %s306 = ssub.s32 %s17, 1
        // Predicated region
        $region13: #{concat_head_with_cross_attention.1} parent=11 // pred_check
          %p307 = pneg %p117
        $region14: #{concat_head_with_cross_attention.1} parent=11 // pred_check_branch
          %309 = sbr.rel (%p307) target = $region16
        $region15: #{concat_head_with_cross_attention.1} parent=11 // pred_region
          _
        $region16: #{concat_head_with_cross_attention.1} parent=11 // pred_fallthru
          _
        // Predicated region
        $region17: #{concat_head_with_cross_attention.1} parent=11 // pred_check
          %p310 = pneg %p138
        $region18: #{concat_head_with_cross_attention.1} parent=11 // pred_check_branch
          %312 = sbr.rel (%p310) target = $region20
        $region19: #{concat_head_with_cross_attention.1} parent=11 // pred_region
          _
        $region20: #{concat_head_with_cross_attention.1} parent=11 // pred_fallthru
          _
        // Predicated region
        $region21: #{concat_head_with_cross_attention.1} parent=11 // pred_check
          %p313 = pneg %p159
        $region22: #{concat_head_with_cross_attention.1} parent=11 // pred_check_branch
          %315 = sbr.rel (%p313) target = $region24
        $region23: #{concat_head_with_cross_attention.1} parent=11 // pred_region
          _
        $region24: #{concat_head_with_cross_attention.1} parent=11 // pred_fallthru
          _
        // Predicated region
        $region25: #{concat_head_with_cross_attention.1} parent=11 // pred_check
          %p316 = pneg %p180
        $region26: #{concat_head_with_cross_attention.1} parent=11 // pred_check_branch
          %318 = sbr.rel (%p316) target = $region28
        $region27: #{concat_head_with_cross_attention.1} parent=11 // pred_region
          _
        $region28: #{concat_head_with_cross_attention.1} parent=11 // pred_fallthru
          _
        // Predicated region
        $region29: #{concat_head_with_cross_attention.1} parent=11 // pred_check
          %p319 = pneg %p201
        $region30: #{concat_head_with_cross_attention.1} parent=11 // pred_check_branch
          %321 = sbr.rel (%p319) target = $region32
        $region31: #{concat_head_with_cross_attention.1} parent=11 // pred_region
          _
        $region32: #{concat_head_with_cross_attention.1} parent=11 // pred_fallthru
          _
        // Predicated region
        $region33: #{concat_head_with_cross_attention.1} parent=11 // pred_check
          %p322 = pneg %p222
        $region34: #{concat_head_with_cross_attention.1} parent=11 // pred_check_branch
          %324 = sbr.rel (%p322) target = $region36
        $region35: #{concat_head_with_cross_attention.1} parent=11 // pred_region
          _
        $region36: #{concat_head_with_cross_attention.1} parent=11 // pred_fallthru
          _
        // Predicated region
        $region37: #{concat_head_with_cross_attention.1} parent=11 // pred_check
          %p325 = pneg %p243
        $region38: #{concat_head_with_cross_attention.1} parent=11 // pred_check_branch
          %327 = sbr.rel (%p325) target = $region40
        $region39: #{concat_head_with_cross_attention.1} parent=11 // pred_region
          _
        $region40: #{concat_head_with_cross_attention.1} parent=11 // pred_fallthru
          _
        // Predicated region
        $region41: #{concat_head_with_cross_attention.1} parent=11 // pred_check
          %p328 = pneg %p264
        $region42: #{concat_head_with_cross_attention.1} parent=11 // pred_check_branch
          %330 = sbr.rel (%p328) target = $region44
        $region43: #{concat_head_with_cross_attention.1} parent=11 // pred_region
          _
        $region44: #{concat_head_with_cross_attention.1} parent=11 // pred_fallthru
          _
      $region12: #{concat_head_with_cross_attention.1} parent=5 // pred_fallthru
        _
      %p331 = scmp.lt.s32.totalorder %s17, 8
      // Predicated region
      $region45: #{concat_head_with_cross_attention.1} parent=5 // pred_check
        %p332 = pneg %p331
      $region46: #{concat_head_with_cross_attention.1} parent=5 // pred_check_branch
        %334 = sbr.rel (%p332) target = $region48
      $region47: #{concat_head_with_cross_attention.1} parent=5 // pred_region
        // Predicated region
        $region49: #{concat_head_with_cross_attention.1} parent=47 // pred_check
          %p335 = pneg %p62
        $region50: #{concat_head_with_cross_attention.1} parent=47 // pred_check_branch
          %337 = sbr.rel (%p335) target = $region52
        $region51: #{concat_head_with_cross_attention.1} parent=47 // pred_region
          %s338 = sand.u32 %s52, 1
          %s339 = sand.u32 %s52, 1
          %s340 = smul.addr %s339, 32
          %s341 = scalar_lea.vmem [#allocation9], %s340
          %p342 = scmp.eq.s32.totalorder %s25, 0
          %s343 = scalar_select %p342, %s26, 0
          %s344 = smul.addr %s24, 8
          %s345 = sadd.s32 %s343, %s344
          %s346 = smul.addr %s345, 8
          %s347 = scalar_lea.vmem %s0, %s346
          // Predicated region
          $region53: #{concat_head_with_cross_attention.1} parent=51 // pred_check
            _
          $region54: #{concat_head_with_cross_attention.1} parent=51 // pred_check_branch
            %349 = sbr.rel (0) target = $region56
          $region55: #{concat_head_with_cross_attention.1} parent=51 // pred_region
            // Predicated region
            $region57: #{concat_head_with_cross_attention.1} parent=55 // pred_check
              _
            $region58: #{concat_head_with_cross_attention.1} parent=55 // pred_check_branch
              %351 = sbr.rel (0) target = $region60
            $region59: #{concat_head_with_cross_attention.1} parent=55 // pred_region
              // Predicated region
              $region72: #{concat_head_with_cross_attention.1} parent=59 // pred_check
                _
              $region73: #{concat_head_with_cross_attention.1} parent=59 // pred_check_branch
                %372 = sbr.rel (0) target = $region75
              $region74: #{concat_head_with_cross_attention.1} parent=59 // pred_region
                loop: start=0, step=1, limit=1
                $region76: #{concat_head_with_cross_attention.1} parent=74 // loop_pre_header
                  _
                $region77: #{concat_head_with_cross_attention.1} parent=74 // loop_header
                  %s374 = sphi 0, %s378
                  %p375 = scmp.ge.s32.totalorder %s374, 1
                  %s379 = sphi %s347, %s347
                  %s380 = sphi %s341, %s341
                $region78: #{concat_head_with_cross_attention.1} parent=74 // loop_header_branch
                  %377 = sbr.rel (%p375) target = $region82
                $region79: #{concat_head_with_cross_attention.1} parent=74 // loop_body
                  %v381 = vld [vmem:[%s379] sm:$0xff]
                  %382 = vst [vmem:[%s380] sm:$0xff] %v381
                  %v383 = vld [vmem:[%s379 + $0x10] sm:$0xff]
                  %384 = vst [vmem:[%s380 + $0x8] sm:$0xff] %v383
                  %v385 = vld [vmem:[%s379 + $0x20] sm:$0xff]
                  %386 = vst [vmem:[%s380 + $0x10] sm:$0xff] %v385
                  %v387 = vld [vmem:[%s379 + $0x30] sm:$0xff]
                  %388 = vst [vmem:[%s380 + $0x18] sm:$0xff] %v387
                $region80: #{concat_head_with_cross_attention.1} parent=74 // loop_footer
                  %s378 = sadd.s32 1, %s374
                $region81: #{concat_head_with_cross_attention.1} parent=74 // loop_footer_branch
                  %373 = sbr.rel target = $region77
                $region82: #{concat_head_with_cross_attention.1} parent=74 // loop_exit
                  _
              $region75: #{concat_head_with_cross_attention.1} parent=59 // pred_fallthru
                _
              // Predicated region
              $region83: #{concat_head_with_cross_attention.1} parent=59 // pred_check
                _
              $region84: #{concat_head_with_cross_attention.1} parent=59 // pred_check_branch
                %390 = sbr.rel target = $region86
              $region85: #{concat_head_with_cross_attention.1} parent=59 // pred_region
                _
              $region86: #{concat_head_with_cross_attention.1} parent=59 // pred_fallthru
                _
            $region60: #{concat_head_with_cross_attention.1} parent=55 // pred_fallthru
              _
            // Predicated region
            $region61: #{concat_head_with_cross_attention.1} parent=55 // pred_check
              _
            $region62: #{concat_head_with_cross_attention.1} parent=55 // pred_check_branch
              %353 = sbr.rel target = $region64
            $region63: #{concat_head_with_cross_attention.1} parent=55 // pred_region
              loop: start=0, step=1, limit=1
              $region65: #{concat_head_with_cross_attention.1} parent=63 // loop_pre_header
                _
              $region66: #{concat_head_with_cross_attention.1} parent=63 // loop_header
                %s356 = sphi 0, %s360
                %p357 = scmp.ge.s32.totalorder %s356, 1
                %s361 = sphi %s347, %s347
                %s362 = sphi %s341, %s341
              $region67: #{concat_head_with_cross_attention.1} parent=63 // loop_header_branch
                %359 = sbr.rel (%p357) target = $region71
              $region68: #{concat_head_with_cross_attention.1} parent=63 // loop_body
                %v363 = vld [vmem:[%s361] sm:$0xff]
                %364 = vst [vmem:[%s362] sm:$0xff] %v363
                %v365 = vld [vmem:[%s361 + $0x10] sm:$0xff]
                %366 = vst [vmem:[%s362 + $0x8] sm:$0xff] %v365
                %v367 = vld [vmem:[%s361 + $0x20] sm:$0xff]
                %368 = vst [vmem:[%s362 + $0x10] sm:$0xff] %v367
                %v369 = vld [vmem:[%s361 + $0x30] sm:$0xff]
                %370 = vst [vmem:[%s362 + $0x18] sm:$0xff] %v369
              $region69: #{concat_head_with_cross_attention.1} parent=63 // loop_footer
                %s360 = sadd.s32 1, %s356
              $region70: #{concat_head_with_cross_attention.1} parent=63 // loop_footer_branch
                %355 = sbr.rel target = $region66
              $region71: #{concat_head_with_cross_attention.1} parent=63 // loop_exit
                _
            $region64: #{concat_head_with_cross_attention.1} parent=55 // pred_fallthru
              _
          $region56: #{concat_head_with_cross_attention.1} parent=51 // pred_fallthru
            _
          %391 = vnop
        $region52: #{concat_head_with_cross_attention.1} parent=47 // pred_fallthru
          _
        // Predicated region
        $region87: #{concat_head_with_cross_attention.1} parent=47 // pred_check
          %p392 = pneg %p90
        $region88: #{concat_head_with_cross_attention.1} parent=47 // pred_check_branch
          %394 = sbr.rel (%p392) target = $region90
        $region89: #{concat_head_with_cross_attention.1} parent=47 // pred_region
          %s395 = sand.u32 %s80, 1
          %s396 = sand.u32 %s80, 1
          %s397 = smul.addr %s396, 16
          %s398 = scalar_lea.vmem [#allocation10], %s397
          %s399 = smul.addr %s24, 4
          %s400 = sadd.s32 %s25, %s399
          %s401 = smul.addr %s400, 8
          %s402 = scalar_lea.vmem %s1, %s401
          // Predicated region
          $region91: #{concat_head_with_cross_attention.1} parent=89 // pred_check
            _
          $region92: #{concat_head_with_cross_attention.1} parent=89 // pred_check_branch
            %404 = sbr.rel (0) target = $region94
          $region93: #{concat_head_with_cross_attention.1} parent=89 // pred_region
            // Predicated region
            $region95: #{concat_head_with_cross_attention.1} parent=93 // pred_check
              _
            $region96: #{concat_head_with_cross_attention.1} parent=93 // pred_check_branch
              %406 = sbr.rel (0) target = $region98
            $region97: #{concat_head_with_cross_attention.1} parent=93 // pred_region
              // Predicated region
              $region110: #{concat_head_with_cross_attention.1} parent=97 // pred_check
                _
              $region111: #{concat_head_with_cross_attention.1} parent=97 // pred_check_branch
                %423 = sbr.rel (0) target = $region113
              $region112: #{concat_head_with_cross_attention.1} parent=97 // pred_region
                loop: start=0, step=1, limit=1
                $region114: #{concat_head_with_cross_attention.1} parent=112 // loop_pre_header
                  _
                $region115: #{concat_head_with_cross_attention.1} parent=112 // loop_header
                  %s425 = sphi 0, %s429
                  %p426 = scmp.ge.s32.totalorder %s425, 1
                  %s430 = sphi %s402, %s402
                  %s431 = sphi %s398, %s398
                $region116: #{concat_head_with_cross_attention.1} parent=112 // loop_header_branch
                  %428 = sbr.rel (%p426) target = $region120
                $region117: #{concat_head_with_cross_attention.1} parent=112 // loop_body
                  %v432 = vld [vmem:[%s430] sm:$0xff]
                  %433 = vst [vmem:[%s431] sm:$0xff] %v432
                  %v434 = vld [vmem:[%s430 + $0x10] sm:$0xff]
                  %435 = vst [vmem:[%s431 + $0x8] sm:$0xff] %v434
                $region118: #{concat_head_with_cross_attention.1} parent=112 // loop_footer
                  %s429 = sadd.s32 1, %s425
                $region119: #{concat_head_with_cross_attention.1} parent=112 // loop_footer_branch
                  %424 = sbr.rel target = $region115
                $region120: #{concat_head_with_cross_attention.1} parent=112 // loop_exit
                  _
              $region113: #{concat_head_with_cross_attention.1} parent=97 // pred_fallthru
                _
              // Predicated region
              $region121: #{concat_head_with_cross_attention.1} parent=97 // pred_check
                _
              $region122: #{concat_head_with_cross_attention.1} parent=97 // pred_check_branch
                %437 = sbr.rel target = $region124
              $region123: #{concat_head_with_cross_attention.1} parent=97 // pred_region
                _
              $region124: #{concat_head_with_cross_attention.1} parent=97 // pred_fallthru
                _
            $region98: #{concat_head_with_cross_attention.1} parent=93 // pred_fallthru
              _
            // Predicated region
            $region99: #{concat_head_with_cross_attention.1} parent=93 // pred_check
              _
            $region100: #{concat_head_with_cross_attention.1} parent=93 // pred_check_branch
              %408 = sbr.rel target = $region102
            $region101: #{concat_head_with_cross_attention.1} parent=93 // pred_region
              loop: start=0, step=1, limit=1
              $region103: #{concat_head_with_cross_attention.1} parent=101 // loop_pre_header
                _
              $region104: #{concat_head_with_cross_attention.1} parent=101 // loop_header
                %s411 = sphi 0, %s415
                %p412 = scmp.ge.s32.totalorder %s411, 1
                %s416 = sphi %s402, %s402
                %s417 = sphi %s398, %s398
              $region105: #{concat_head_with_cross_attention.1} parent=101 // loop_header_branch
                %414 = sbr.rel (%p412) target = $region109
              $region106: #{concat_head_with_cross_attention.1} parent=101 // loop_body
                %v418 = vld [vmem:[%s416] sm:$0xff]
                %419 = vst [vmem:[%s417] sm:$0xff] %v418
                %v420 = vld [vmem:[%s416 + $0x10] sm:$0xff]
                %421 = vst [vmem:[%s417 + $0x8] sm:$0xff] %v420
              $region107: #{concat_head_with_cross_attention.1} parent=101 // loop_footer
                %s415 = sadd.s32 1, %s411
              $region108: #{concat_head_with_cross_attention.1} parent=101 // loop_footer_branch
                %410 = sbr.rel target = $region104
              $region109: #{concat_head_with_cross_attention.1} parent=101 // loop_exit
                _
            $region102: #{concat_head_with_cross_attention.1} parent=93 // pred_fallthru
              _
          $region94: #{concat_head_with_cross_attention.1} parent=89 // pred_fallthru
            _
          %438 = vnop
        $region90: #{concat_head_with_cross_attention.1} parent=47 // pred_fallthru
          _
      $region48: #{concat_head_with_cross_attention.1} parent=5 // pred_fallthru
        _
      %p439 = scmp.le.s32.totalorder 1, %s17
      %p440 = scmp.lt.s32.totalorder %s17, 9
      %p441 = pnand %p439, %p440
      %p442 = pneg %p441
      // Predicated region
      $region125: #{concat_head_with_cross_attention.1} parent=5 // pred_check
        _
      $region126: #{concat_head_with_cross_attention.1} parent=5 // pred_check_branch
        %444 = sbr.rel (%p441) target = $region128
      $region127: #{concat_head_with_cross_attention.1} parent=5 // pred_region
        %s445 = ssub.s32 %s17, 1
        %s446 = sand.u32 %s55, 1
        %s447 = sand.u32 %s55, 1
        %s448 = smul.addr %s447, 32
        %s449 = scalar_lea.vmem [#allocation9], %s448
        // Predicated region
        $region129: #{concat_head_with_cross_attention.1} parent=127 // pred_check
          %p450 = pneg %p68
        $region130: #{concat_head_with_cross_attention.1} parent=127 // pred_check_branch
          %452 = sbr.rel (%p450) target = $region132
        $region131: #{concat_head_with_cross_attention.1} parent=127 // pred_region
          _
        $region132: #{concat_head_with_cross_attention.1} parent=127 // pred_fallthru
          _
        %s453 = sand.u32 %s83, 1
        %s454 = sand.u32 %s83, 1
        %s455 = smul.addr %s454, 16
        %s456 = scalar_lea.vmem [#allocation10], %s455
        // Predicated region
        $region133: #{concat_head_with_cross_attention.1} parent=127 // pred_check
          %p457 = pneg %p96
        $region134: #{concat_head_with_cross_attention.1} parent=127 // pred_check_branch
          %459 = sbr.rel (%p457) target = $region136
        $region135: #{concat_head_with_cross_attention.1} parent=127 // pred_region
          _
        $region136: #{concat_head_with_cross_attention.1} parent=127 // pred_fallthru
          _
        %s460 = sand.u32 %s55, 1
        %s461 = sand.u32 %s55, 1
        %s462 = smul.addr %s461, 32
        %s463 = scalar_lea.vmem [#allocation9], %s462
        %p464 = pneg %p68
        %p465 = pneg %p65
        %s466 = sand.u32 %s83, 1
        %s467 = sand.u32 %s83, 1
        %s468 = smul.addr %s467, 16
        %s469 = scalar_lea.vmem [#allocation10], %s468
        %p470 = pneg %p96
        %p471 = pneg %p93
        %p472 = pneg %p117
        %p473 = pneg %p114
        %p474 = pneg %p138
        %p475 = pneg %p135
        %p476 = pneg %p159
        %p477 = pneg %p156
        %p478 = pneg %p180
        %p479 = pneg %p177
        %p480 = pneg %p201
        %p481 = pneg %p198
        %p482 = pneg %p222
        %p483 = pneg %p219
        %p484 = pneg %p243
        %p485 = pneg %p240
        %p486 = pneg %p264
        %p487 = pneg %p261
        %p488 = pneg %p292
        %p489 = pneg %p289
        %s490 = sand.u32 %s279, 1
        %s491 = sand.u32 %s279, 1
        %s492 = smul.addr %s491, 32
        %s493 = scalar_lea.vmem [#allocation11], %s492
        %p494 = scmp.eq.s32.totalorder %s28, 0
        %s495 = scalar_select %p494, %s29, 0
        %s497 = smul.u32 %s29, 128
        %p498 = scmp.eq.s32.totalorder %s28, 0
        // Predicated region
        $region137: #{concat_head_with_cross_attention.1} parent=127 // pred_check
          %p499 = pneg %p498
        $region138: #{concat_head_with_cross_attention.1} parent=127 // pred_check_branch
          %501 = sbr.rel (%p499) target = $region140
        $region139: #{concat_head_with_cross_attention.1} parent=127 // pred_region
          %v502 = vld [vmem:[%s449] sm:$0xff]
          %v503 = vld [vmem:[%s449 + $0x8] sm:$0xff]
          %v504 = vld [vmem:[%s449 + $0x10] sm:$0xff]
          %v505 = vld [vmem:[%s449 + $0x18] sm:$0xff]
          %v506 = vpack.c.bf16 %v503, %v502
          %v507 = vpack.c.bf16 %v505, %v504
          %v508 = vld [vmem:[%s2] sm:$0xf]
          %v509 = vld [vmem:[%s2 + $0x4] sm:$0xf]
          %v510 = vld [vmem:[%s2 + $0x8] sm:$0xf]
          %v511 = vld [vmem:[%s2 + $0xc] sm:$0xf]
          %v512 = vld [vmem:[%s8] sm:$0xff]
          %v513 = vld [vmem:[%s8 + $0x8] sm:$0xff]
          %v514 = vld [vmem:[%s8 + $0x10] sm:$0xff]
          %v515 = vld [vmem:[%s8 + $0x18] sm:$0xff]
          %517 = vset.pattern.permute.xlu0 0
          %518 = vperm.xlu0 %517, %v512
          %v519 = vpop.permute.xlu0 %518
          %522 = vset.pattern.permute.xlu0 0
          %523 = vperm.xlu0 %522, %v513
          %v524 = vpop.permute.xlu0 %523
          %527 = vset.pattern.permute.xlu0 0
          %528 = vperm.xlu0 %527, %v514
          %v529 = vpop.permute.xlu0 %528
          %532 = vset.pattern.permute.xlu0 0
          %533 = vperm.xlu0 %532, %v515
          %v534 = vpop.permute.xlu0 %533
          %v540 = vunpack.c.l.b16 %v508
          %v541 = vunpack.c.l.b16 %v509
          %v542 = vunpack.c.l.b16 %v510
          %v543 = vunpack.c.l.b16 %v511
          %v544 = vpack.c.b16 %v541, %v540
          %v545 = vpack.c.b16 %v543, %v542
          %vm546 = vcmask 261120
          %v548 = vsel %vm546, %v544, 0
          %v551 = vsel %vm546, %v545, 0
          %553 = vmatprep.subr.bf16.mxu0 0
          %554 = vmatpush1.bf16.msra.mxu0 %v506
          %555 = vmatprep.subr.bf16.mxu0 0
          %556 = vmatpush1.bf16.msra.mxu0 %v507
          %557 = vmatprep.subr.bf16.mxu0 0
          %558 = vmatpush1.bf16.msra.mxu0 0
          %559 = vmatprep.subr.bf16.mxu0 0
          %560 = vmatpush1.bf16.msra.mxu0 0
          %561 = vmatprep.subr.bf16.mxu0 0
          %562 = vmatpush1.bf16.msra.mxu0 0
          %563 = vmatprep.subr.bf16.mxu0 0
          %564 = vmatpush1.bf16.msra.mxu0 0
          %565 = vmatprep.subr.bf16.mxu0 0
          %566 = vmatpush1.bf16.msra.mxu0 0
          %567 = vmatprep.subr.bf16.mxu0 0
          %568 = vmatpush1.bf16.msra.mxu0 0
          %569 = vmatprep.subr.bf16.mxu0 0
          %570 = vmatpush1.bf16.msra.mxu0 0
          %571 = vmatprep.subr.bf16.mxu0 0
          %572 = vmatpush1.bf16.msra.mxu0 0
          %573 = vmatprep.subr.bf16.mxu0 0
          %574 = vmatpush1.bf16.msra.mxu0 0
          %575 = vmatprep.subr.bf16.mxu0 0
          %576 = vmatpush1.bf16.msra.mxu0 0
          %577 = vmatprep.subr.bf16.mxu0 0
          %578 = vmatpush1.bf16.msra.mxu0 0
          %579 = vmatprep.subr.bf16.mxu0 0
          %580 = vmatpush1.bf16.msra.mxu0 0
          %581 = vmatprep.subr.bf16.mxu0 0
          %582 = vmatpush1.bf16.msra.mxu0 0
          %583 = vmatprep.subr.bf16.mxu0 0
          %584 = vmatpush1.bf16.msra.mxu0 0
          %585 = vmatprep.mubr.bf16.mxu0 0
          %586 = vmatmul.mubr.bf16.gmra.mrb[0].mxu0 %v548
          %v587 = vpop.f32.mrb[0].mxu0
          %v588 = vadd.f32 %v519, %v587
          %v589 = vpop.f32.mrb[0].mxu0
          %v590 = vpop.f32.mrb[0].mxu0
          %v591 = vadd.f32 %v524, %v590
          %v592 = vpop.f32.mrb[0].mxu0
          %593 = vmatprep.mubr.bf16.mxu0 0
          %594 = vmatmul.mubr.bf16.gmra.mrb[0].mxu0 %v551
          %v595 = vpop.f32.mrb[0].mxu0
          %v596 = vadd.f32 %v529, %v595
          %v597 = vpop.f32.mrb[0].mxu0
          %v598 = vpop.f32.mrb[0].mxu0
          %v599 = vadd.f32 %v534, %v598
          %v600 = vpop.f32.mrb[0].mxu0
          %601 = vdwg.mxu0
          %s602 = sshra.s32 %s497, 7
          %s603 = sand.u32 %s497, 127
          %s604 = smul.addr %s602, 8
          %s605 = scalar_lea.vmem [#allocation2], %s604
          %606 = vst [vmem:[%s605] sm:$0xff] %v588
          %607 = vst [vmem:[%s605 + $0x10] sm:$0xff] %v591
          %608 = vst [vmem:[%s605 + $0x20] sm:$0xff] %v596
          %609 = vst [vmem:[%s605 + $0x30] sm:$0xff] %v599
          %v610 = vpack.c.bf16 %v591, %v588
          %v611 = vpack.c.bf16 %v599, %v596
          %v612 = vld [vmem:[%s4] sm:$0xf]
          %v613 = vld [vmem:[%s4 + $0x4] sm:$0xf]
          %v614 = vld [vmem:[%s8 + $0x30] sm:$0xff]
          %v615 = vld [vmem:[%s8 + $0x38] sm:$0xff]
          %617 = vset.pattern.permute.xlu0 0
          %618 = vperm.xlu0 %617, %v614
          %v619 = vpop.permute.xlu0 %618
          %622 = vset.pattern.permute.xlu0 0
          %623 = vperm.xlu0 %622, %v615
          %v624 = vpop.permute.xlu0 %623
          %v628 = vunpack.c.l.b16 %v612
          %v629 = vunpack.c.l.b16 %v613
          %v630 = vpack.c.b16 %v629, %v628
          %v632 = vsel %vm546, %v630, 0
          %634 = vmatprep.subr.bf16.mxu0 0
          %635 = vmatpush1.bf16.msra.mxu0 %v610
          %636 = vmatprep.subr.bf16.mxu0 0
          %637 = vmatpush1.bf16.msra.mxu0 %v611
          %638 = vmatprep.subr.bf16.mxu0 0
          %639 = vmatpush1.bf16.msra.mxu0 0
          %640 = vmatprep.subr.bf16.mxu0 0
          %641 = vmatpush1.bf16.msra.mxu0 0
          %642 = vmatprep.subr.bf16.mxu0 0
          %643 = vmatpush1.bf16.msra.mxu0 0
          %644 = vmatprep.subr.bf16.mxu0 0
          %645 = vmatpush1.bf16.msra.mxu0 0
          %646 = vmatprep.subr.bf16.mxu0 0
          %647 = vmatpush1.bf16.msra.mxu0 0
          %648 = vmatprep.subr.bf16.mxu0 0
          %649 = vmatpush1.bf16.msra.mxu0 0
          %650 = vmatprep.subr.bf16.mxu0 0
          %651 = vmatpush1.bf16.msra.mxu0 0
          %652 = vmatprep.subr.bf16.mxu0 0
          %653 = vmatpush1.bf16.msra.mxu0 0
          %654 = vmatprep.subr.bf16.mxu0 0
          %655 = vmatpush1.bf16.msra.mxu0 0
          %656 = vmatprep.subr.bf16.mxu0 0
          %657 = vmatpush1.bf16.msra.mxu0 0
          %658 = vmatprep.subr.bf16.mxu0 0
          %659 = vmatpush1.bf16.msra.mxu0 0
          %660 = vmatprep.subr.bf16.mxu0 0
          %661 = vmatpush1.bf16.msra.mxu0 0
          %662 = vmatprep.subr.bf16.mxu0 0
          %663 = vmatpush1.bf16.msra.mxu0 0
          %664 = vmatprep.subr.bf16.mxu0 0
          %665 = vmatpush1.bf16.msra.mxu0 0
          %666 = vmatprep.mubr.bf16.mxu0 0
          %667 = vmatmul.mubr.bf16.gmra.mrb[0].mxu0 %v632
          %v668 = vpop.f32.mrb[0].mxu0
          %v669 = vadd.f32 %v619, %v668
          %v670 = vpop.f32.mrb[0].mxu0
          %v671 = vpop.f32.mrb[0].mxu0
          %v672 = vadd.f32 %v624, %v671
          %v673 = vpop.f32.mrb[0].mxu0
          %674 = vdwg.mxu0
          %v675 = vld [vmem:[%s5] sm:$0xf]
          %v676 = vld [vmem:[%s5 + $0x4] sm:$0xf]
          %v677 = vld [vmem:[%s5 + $0x8] sm:$0xf]
          %v678 = vld [vmem:[%s5 + $0xc] sm:$0xf]
          %v679 = vld [vmem:[%s5 + $0x10] sm:$0xf]
          %v680 = vld [vmem:[%s5 + $0x14] sm:$0xf]
          %v681 = vld [vmem:[%s8 + $0x40] sm:$0xff]
          %v682 = vld [vmem:[%s8 + $0x48] sm:$0xff]
          %v683 = vld [vmem:[%s8 + $0x50] sm:$0xff]
          %v684 = vld [vmem:[%s8 + $0x58] sm:$0xff]
          %v685 = vld [vmem:[%s8 + $0x60] sm:$0xff]
          %v686 = vld [vmem:[%s8 + $0x68] sm:$0xff]
          %688 = vset.pattern.permute.xlu0 0
          %689 = vperm.xlu0 %688, %v681
          %v690 = vpop.permute.xlu0 %689
          %693 = vset.pattern.permute.xlu0 0
          %694 = vperm.xlu0 %693, %v682
          %v695 = vpop.permute.xlu0 %694
          %698 = vset.pattern.permute.xlu0 0
          %699 = vperm.xlu0 %698, %v683
          %v700 = vpop.permute.xlu0 %699
          %703 = vset.pattern.permute.xlu0 0
          %704 = vperm.xlu0 %703, %v684
          %v705 = vpop.permute.xlu0 %704
          %708 = vset.pattern.permute.xlu0 0
          %709 = vperm.xlu0 %708, %v685
          %v710 = vpop.permute.xlu0 %709
          %713 = vset.pattern.permute.xlu0 0
          %714 = vperm.xlu0 %713, %v686
          %v715 = vpop.permute.xlu0 %714
          %v723 = vunpack.c.l.b16 %v675
          %v724 = vunpack.c.l.b16 %v676
          %v725 = vunpack.c.l.b16 %v677
          %v726 = vunpack.c.l.b16 %v678
          %v727 = vunpack.c.l.b16 %v679
          %v728 = vunpack.c.l.b16 %v680
          %v729 = vpack.c.b16 %v724, %v723
          %v730 = vpack.c.b16 %v726, %v725
          %v731 = vpack.c.b16 %v728, %v727
          %v733 = vsel %vm546, %v729, 0
          %v736 = vsel %vm546, %v730, 0
          %v739 = vsel %vm546, %v731, 0
          %741 = vmatprep.subr.bf16.mxu0 0
          %742 = vmatpush1.bf16.msra.mxu0 %v610
          %743 = vmatprep.subr.bf16.mxu0 0
          %744 = vmatpush1.bf16.msra.mxu0 %v611
          %745 = vmatprep.subr.bf16.mxu0 0
          %746 = vmatpush1.bf16.msra.mxu0 0
          %747 = vmatprep.subr.bf16.mxu0 0
          %748 = vmatpush1.bf16.msra.mxu0 0
          %749 = vmatprep.subr.bf16.mxu0 0
          %750 = vmatpush1.bf16.msra.mxu0 0
          %751 = vmatprep.subr.bf16.mxu0 0
          %752 = vmatpush1.bf16.msra.mxu0 0
          %753 = vmatprep.subr.bf16.mxu0 0
          %754 = vmatpush1.bf16.msra.mxu0 0
          %755 = vmatprep.subr.bf16.mxu0 0
          %756 = vmatpush1.bf16.msra.mxu0 0
          %757 = vmatprep.subr.bf16.mxu0 0
          %758 = vmatpush1.bf16.msra.mxu0 0
          %759 = vmatprep.subr.bf16.mxu0 0
          %760 = vmatpush1.bf16.msra.mxu0 0
          %761 = vmatprep.subr.bf16.mxu0 0
          %762 = vmatpush1.bf16.msra.mxu0 0
          %763 = vmatprep.subr.bf16.mxu0 0
          %764 = vmatpush1.bf16.msra.mxu0 0
          %765 = vmatprep.subr.bf16.mxu0 0
          %766 = vmatpush1.bf16.msra.mxu0 0
          %767 = vmatprep.subr.bf16.mxu0 0
          %768 = vmatpush1.bf16.msra.mxu0 0
          %769 = vmatprep.subr.bf16.mxu0 0
          %770 = vmatpush1.bf16.msra.mxu0 0
          %771 = vmatprep.subr.bf16.mxu0 0
          %772 = vmatpush1.bf16.msra.mxu0 0
          %773 = vmatprep.mubr.bf16.mxu0 0
          %774 = vmatmul.mubr.bf16.gmra.mrb[0].mxu0 %v733
          %v775 = vpop.f32.mrb[0].mxu0
          %v776 = vadd.f32 %v690, %v775
          %v777 = vpop.f32.mrb[0].mxu0
          %v778 = vpop.f32.mrb[0].mxu0
          %v779 = vadd.f32 %v695, %v778
          %v780 = vpop.f32.mrb[0].mxu0
          %781 = vmatprep.mubr.bf16.mxu0 0
          %782 = vmatmul.mubr.bf16.gmra.mrb[0].mxu0 %v736
          %v783 = vpop.f32.mrb[0].mxu0
          %v784 = vadd.f32 %v700, %v783
          %v785 = vpop.f32.mrb[0].mxu0
          %v786 = vpop.f32.mrb[0].mxu0
          %v787 = vadd.f32 %v705, %v786
          %v788 = vpop.f32.mrb[0].mxu0
          %789 = vmatprep.mubr.bf16.mxu0 0
          %790 = vmatmul.mubr.bf16.gmra.mrb[0].mxu0 %v739
          %v791 = vpop.f32.mrb[0].mxu0
          %v792 = vadd.f32 %v710, %v791
          %v793 = vpop.f32.mrb[0].mxu0
          %v794 = vpop.f32.mrb[0].mxu0
          %v795 = vadd.f32 %v715, %v794
          %v796 = vpop.f32.mrb[0].mxu0
          %797 = vdwg.mxu0
          %v798 = vpack.c.bf16 %v672, %v669
          %s799 = smul.addr %s602, 8
          %s800 = scalar_lea.vmem [#allocation3], %s799
          %801 = vst [vmem:[%s800] sm:$0xff] %v798
          %v802 = vpack.c.bf16 %v779, %v776
          %v803 = vpack.c.bf16 %v787, %v784
          %v804 = vpack.c.bf16 %v795, %v792
          %s805 = smul.addr %s602, 8
          %s806 = scalar_lea.vmem [#allocation4], %s805
          %807 = vst [vmem:[%s806] sm:$0xff] %v802
          %808 = vst [vmem:[%s806 + $0x10] sm:$0xff] %v803
          %809 = vst [vmem:[%s806 + $0x20] sm:$0xff] %v804
        $region140: #{concat_head_with_cross_attention.1} parent=127 // pred_fallthru
          _
        %p810 = scmp.eq.s32.totalorder %s29, 0
        // Predicated region
        $region141: #{concat_head_with_cross_attention.1} parent=127 // pred_check
          %p811 = pneg %p810
        $region142: #{concat_head_with_cross_attention.1} parent=127 // pred_check_branch
          %813 = sbr.rel (%p811) target = $region144
        $region143: #{concat_head_with_cross_attention.1} parent=127 // pred_region
          %v814 = vld [vmem:[%s456] sm:$0xff]
          %v815 = vld [vmem:[%s456 + $0x8] sm:$0xff]
          %v816 = vpack.c.bf16 %v815, %v814
          %v817 = vld [vmem:[%s3] sm:$0xf]
          %v818 = vld [vmem:[%s3 + $0x4] sm:$0xf]
          %v819 = vld [vmem:[%s8 + $0x20] sm:$0xff]
          %v820 = vld [vmem:[%s8 + $0x28] sm:$0xff]
          %822 = vset.pattern.permute.xlu0 0
          %823 = vperm.xlu0 %822, %v819
          %v824 = vpop.permute.xlu0 %823
          %827 = vset.pattern.permute.xlu0 0
          %828 = vperm.xlu0 %827, %v820
          %v829 = vpop.permute.xlu0 %828
          %v833 = vunpack.c.l.b16 %v817
          %v834 = vunpack.c.l.b16 %v818
          %v835 = vpack.c.b16 %v834, %v833
          %vm836 = vcmask 130048
          %v838 = vsel %vm836, %v835, 0
          %840 = vmatprep.subr.bf16.mxu0 0
          %841 = vmatpush1.bf16.msra.mxu0 %v816
          %842 = vmatprep.subr.bf16.mxu0 0
          %843 = vmatpush1.bf16.msra.mxu0 0
          %844 = vmatprep.subr.bf16.mxu0 0
          %845 = vmatpush1.bf16.msra.mxu0 0
          %846 = vmatprep.subr.bf16.mxu0 0
          %847 = vmatpush1.bf16.msra.mxu0 0
          %848 = vmatprep.subr.bf16.mxu0 0
          %849 = vmatpush1.bf16.msra.mxu0 0
          %850 = vmatprep.subr.bf16.mxu0 0
          %851 = vmatpush1.bf16.msra.mxu0 0
          %852 = vmatprep.subr.bf16.mxu0 0
          %853 = vmatpush1.bf16.msra.mxu0 0
          %854 = vmatprep.subr.bf16.mxu0 0
          %855 = vmatpush1.bf16.msra.mxu0 0
          %856 = vmatprep.subr.bf16.mxu0 0
          %857 = vmatpush1.bf16.msra.mxu0 0
          %858 = vmatprep.subr.bf16.mxu0 0
          %859 = vmatpush1.bf16.msra.mxu0 0
          %860 = vmatprep.subr.bf16.mxu0 0
          %861 = vmatpush1.bf16.msra.mxu0 0
          %862 = vmatprep.subr.bf16.mxu0 0
          %863 = vmatpush1.bf16.msra.mxu0 0
          %864 = vmatprep.subr.bf16.mxu0 0
          %865 = vmatpush1.bf16.msra.mxu0 0
          %866 = vmatprep.subr.bf16.mxu0 0
          %867 = vmatpush1.bf16.msra.mxu0 0
          %868 = vmatprep.subr.bf16.mxu0 0
          %869 = vmatpush1.bf16.msra.mxu0 0
          %870 = vmatprep.subr.bf16.mxu0 0
          %871 = vmatpush1.bf16.msra.mxu0 0
          %872 = vmatprep.mubr.bf16.mxu0 0
          %873 = vmatmul.mubr.bf16.gmra.mrb[0].mxu0 %v838
          %v874 = vpop.f32.mrb[0].mxu0
          %v875 = vadd.f32 %v824, %v874
          %v876 = vpop.f32.mrb[0].mxu0
          %v877 = vpop.f32.mrb[0].mxu0
          %v878 = vadd.f32 %v829, %v877
          %v879 = vpop.f32.mrb[0].mxu0
          %880 = vdwg.mxu0
          %v881 = vpack.c.bf16 %v878, %v875
          %882 = vst [vmem:[#allocation5] sm:$0xff] %v881
          %883 = vst [vmem:[#allocation6] sm:$0x1] -1e+30
          %884 = vst [vmem:[#allocation7] sm:$0xff] 0.0
          %885 = vst [vmem:[#allocation7 + $0x8] sm:$0xff] 0.0
          %886 = vst [vmem:[#allocation7 + $0x10] sm:$0xff] 0.0
          %887 = vst [vmem:[#allocation7 + $0x18] sm:$0xff] 0.0
          %888 = vst [vmem:[#allocation7 + $0x20] sm:$0xff] 0.0
          %889 = vst [vmem:[#allocation7 + $0x28] sm:$0xff] 0.0
        $region144: #{concat_head_with_cross_attention.1} parent=127 // pred_fallthru
          _
        %s890 = sshra.s32 %s497, 7
        %s891 = sand.u32 %s497, 127
        %s892 = smul.addr %s890, 8
        %s893 = scalar_lea.vmem [#allocation3], %s892
        %v894 = vld [vmem:[%s893] sm:$0xff]
        %s895 = smul.addr %s890, 8
        %s896 = scalar_lea.vmem [#allocation4], %s895
        %v897 = vld [vmem:[%s896] sm:$0xff]
        %v898 = vld [vmem:[%s896 + $0x10] sm:$0xff]
        %v899 = vld [vmem:[%s896 + $0x20] sm:$0xff]
        %v900 = vld [vmem:[#allocation5] sm:$0xff]
        %901 = vxpose.xlu0.c.b16.start [1/8] %v894, 128
        %902 = vxpose.xlu0.c.b16.cont [2/8] 0, 128
        %903 = vxpose.xlu0.c.b16.cont [3/8] 0, 128
        %904 = vxpose.xlu0.c.b16.cont [4/8] 0, 128
        %905 = vxpose.xlu0.c.b16.cont [5/8] 0, 128
        %906 = vxpose.xlu0.c.b16.cont [6/8] 0, 128
        %907 = vxpose.xlu0.c.b16.cont [7/8] 0, 128
        %908 = vxpose.xlu0.c.b16.end [8/8] 0, 128
        %v909 = vpop.trf.xlu0
        %v910 = vpop.trf.xlu0
        %v911 = vpop.trf.xlu0
        %v912 = vpop.trf.xlu0
        %v913 = vpop.trf.xlu0
        %v914 = vpop.trf.xlu0
        %v915 = vpop.trf.xlu0
        %v916 = vpop.trf.xlu0
        %vm917 = vcmask 130048
        %v919 = vsel %vm917, %v909, 0
        %v922 = vsel %vm917, %v910, 0
        %v925 = vsel %vm917, %v911, 0
        %v928 = vsel %vm917, %v912, 0
        %v931 = vsel %vm917, %v913, 0
        %v934 = vsel %vm917, %v914, 0
        %v937 = vsel %vm917, %v915, 0
        %v940 = vsel %vm917, %v916, 0
        %942 = vmatprep.subr.bf16.mxu0 0
        %943 = vmatpush1.bf16.msra.mxu0 %v900
        %944 = vmatprep.subr.bf16.mxu0 0
        %945 = vmatpush1.bf16.msra.mxu0 0
        %946 = vmatprep.subr.bf16.mxu0 0
        %947 = vmatpush1.bf16.msra.mxu0 0
        %948 = vmatprep.subr.bf16.mxu0 0
        %949 = vmatpush1.bf16.msra.mxu0 0
        %950 = vmatprep.subr.bf16.mxu0 0
        %951 = vmatpush1.bf16.msra.mxu0 0
        %952 = vmatprep.subr.bf16.mxu0 0
        %953 = vmatpush1.bf16.msra.mxu0 0
        %954 = vmatprep.subr.bf16.mxu0 0
        %955 = vmatpush1.bf16.msra.mxu0 0
        %956 = vmatprep.subr.bf16.mxu0 0
        %957 = vmatpush1.bf16.msra.mxu0 0
        %958 = vmatprep.subr.bf16.mxu0 0
        %959 = vmatpush1.bf16.msra.mxu0 0
        %960 = vmatprep.subr.bf16.mxu0 0
        %961 = vmatpush1.bf16.msra.mxu0 0
        %962 = vmatprep.subr.bf16.mxu0 0
        %963 = vmatpush1.bf16.msra.mxu0 0
        %964 = vmatprep.subr.bf16.mxu0 0
        %965 = vmatpush1.bf16.msra.mxu0 0
        %966 = vmatprep.subr.bf16.mxu0 0
        %967 = vmatpush1.bf16.msra.mxu0 0
        %968 = vmatprep.subr.bf16.mxu0 0
        %969 = vmatpush1.bf16.msra.mxu0 0
        %970 = vmatprep.subr.bf16.mxu0 0
        %971 = vmatpush1.bf16.msra.mxu0 0
        %972 = vmatprep.subr.bf16.mxu0 0
        %973 = vmatpush1.bf16.msra.mxu0 0
        %974 = vmatprep.mubr.bf16.mxu0 0
        %975 = vmatmul.mubr.bf16.gmra.mrb[0].mxu0 %v919
        %v976 = vpop.f32.mrb[0].mxu0
        %v977 = vadd.f32 0.0, %v976
        %v978 = vpop.f32.mrb[0].mxu0
        %v979 = vpop.f32.mrb[0].mxu0
        %v980 = vadd.f32 0.0, %v979
        %v981 = vpop.f32.mrb[0].mxu0
        %982 = vmatprep.mubr.bf16.mxu0 0
        %983 = vmatmul.mubr.bf16.gmra.mrb[0].mxu0 %v922
        %v984 = vpop.f32.mrb[0].mxu0
        %v985 = vadd.f32 0.0, %v984
        %v986 = vpop.f32.mrb[0].mxu0
        %v987 = vpop.f32.mrb[0].mxu0
        %v988 = vadd.f32 0.0, %v987
        %v989 = vpop.f32.mrb[0].mxu0
        %990 = vmatprep.mubr.bf16.mxu0 0
        %991 = vmatmul.mubr.bf16.gmra.mrb[0].mxu0 %v925
        %v992 = vpop.f32.mrb[0].mxu0
        %v993 = vadd.f32 0.0, %v992
        %v994 = vpop.f32.mrb[0].mxu0
        %v995 = vpop.f32.mrb[0].mxu0
        %v996 = vadd.f32 0.0, %v995
        %v997 = vpop.f32.mrb[0].mxu0
        %998 = vmatprep.mubr.bf16.mxu0 0
        %999 = vmatmul.mubr.bf16.gmra.mrb[0].mxu0 %v928
        %v1000 = vpop.f32.mrb[0].mxu0
        %v1001 = vadd.f32 0.0, %v1000
        %v1002 = vpop.f32.mrb[0].mxu0
        %v1003 = vpop.f32.mrb[0].mxu0
        %v1004 = vadd.f32 0.0, %v1003
        %v1005 = vpop.f32.mrb[0].mxu0
        %1006 = vmatprep.mubr.bf16.mxu0 0
        %1007 = vmatmul.mubr.bf16.gmra.mrb[0].mxu0 %v931
        %v1008 = vpop.f32.mrb[0].mxu0
        %v1009 = vadd.f32 0.0, %v1008
        %v1010 = vpop.f32.mrb[0].mxu0
        %v1011 = vpop.f32.mrb[0].mxu0
        %v1012 = vadd.f32 0.0, %v1011
        %v1013 = vpop.f32.mrb[0].mxu0
        %1014 = vmatprep.mubr.bf16.mxu0 0
        %1015 = vmatmul.mubr.bf16.gmra.mrb[0].mxu0 %v934
        %v1016 = vpop.f32.mrb[0].mxu0
        %v1017 = vadd.f32 0.0, %v1016
        %v1018 = vpop.f32.mrb[0].mxu0
        %v1019 = vpop.f32.mrb[0].mxu0
        %v1020 = vadd.f32 0.0, %v1019
        %v1021 = vpop.f32.mrb[0].mxu0
        %1022 = vmatprep.mubr.bf16.mxu0 0
        %1023 = vmatmul.mubr.bf16.gmra.mrb[0].mxu0 %v937
        %v1024 = vpop.f32.mrb[0].mxu0
        %v1025 = vadd.f32 0.0, %v1024
        %v1026 = vpop.f32.mrb[0].mxu0
        %v1027 = vpop.f32.mrb[0].mxu0
        %v1028 = vadd.f32 0.0, %v1027
        %v1029 = vpop.f32.mrb[0].mxu0
        %1030 = vmatprep.mubr.bf16.mxu0 0
        %1031 = vmatmul.mubr.bf16.gmra.mrb[0].mxu0 %v940
        %v1032 = vpop.f32.mrb[0].mxu0
        %v1033 = vadd.f32 0.0, %v1032
        %v1034 = vpop.f32.mrb[0].mxu0
        %v1035 = vpop.f32.mrb[0].mxu0
        %v1036 = vadd.f32 0.0, %v1035
        %v1037 = vpop.f32.mrb[0].mxu0
        %1038 = vdwg.mxu0
        %v1039 = vmax.f32 %v977, %v993
        %v1040 = vmax.f32 %v980, %v996
        %v1041 = vmax.f32 %v985, %v1001
        %v1042 = vmax.f32 %v988, %v1004
        %v1043 = vmax.f32 %v1039, %v1009
        %v1044 = vmax.f32 %v1040, %v1012
        %v1045 = vmax.f32 %v1041, %v1017
        %v1046 = vmax.f32 %v1042, %v1020
        %v1047 = vmax.f32 %v1043, %v1025
        %v1048 = vmax.f32 %v1044, %v1028
        %v1049 = vmax.f32 %v1045, %v1033
        %v1050 = vmax.f32 %v1046, %v1036
        %v1051 = vmax.f32 %v1047, %v1048
        %v1052 = vmax.f32 %v1049, %v1050
        %v1053 = vmax.f32 %v1051, %v1052
        %v1054 = vrot.slane %v1053, 4
        %v1055 = vmax.f32 %v1053, %v1054
        %v1056 = vrot.slane %v1055, 2
        %v1057 = vmax.f32 %v1055, %v1056
        %v1058 = vrot.slane %v1057, 1
        %v1059 = vmax.f32 %v1057, %v1058
        %v1060 = vld [vmem:[#allocation6] sm:$0x1]
        %v1061 = vmax.f32 %v1060, %v1059
        %v1062 = vsub.f32 %v1060, %v1061
        %v1063 = vmul.f32 %v1062, 1.442695
        %v1064 = vpow.pop %v1063
        %v1066 = vlaneseq
        %v1067 = vshrl.u32 %v1066, 7
        %v1068 = vsub.s32 0, %v1067
        %v1069 = vrot.slane %v1061, %v1068
        %v1071 = vsub.f32 %v977, %v1069
        %v1072 = vsub.f32 %v980, %v1069
        %v1073 = vsub.f32 %v985, %v1069
        %v1074 = vsub.f32 %v988, %v1069
        %v1075 = vsub.f32 %v993, %v1069
        %v1076 = vsub.f32 %v996, %v1069
        %v1077 = vsub.f32 %v1001, %v1069
        %v1078 = vsub.f32 %v1004, %v1069
        %v1079 = vsub.f32 %v1009, %v1069
        %v1080 = vsub.f32 %v1012, %v1069
        %v1081 = vsub.f32 %v1017, %v1069
        %v1082 = vsub.f32 %v1020, %v1069
        %v1083 = vsub.f32 %v1025, %v1069
        %v1084 = vsub.f32 %v1028, %v1069
        %v1085 = vsub.f32 %v1033, %v1069
        %v1086 = vsub.f32 %v1036, %v1069
        %v1087 = vmul.f32 %v1071, 1.442695
        %v1088 = vpow.pop %v1087
        %v1089 = vmul.f32 %v1072, 1.442695
        %v1090 = vpow.pop %v1089
        %v1091 = vmul.f32 %v1073, 1.442695
        %v1092 = vpow.pop %v1091
        %v1093 = vmul.f32 %v1074, 1.442695
        %v1094 = vpow.pop %v1093
        %v1095 = vmul.f32 %v1075, 1.442695
        %v1096 = vpow.pop %v1095
        %v1097 = vmul.f32 %v1076, 1.442695
        %v1098 = vpow.pop %v1097
        %v1099 = vmul.f32 %v1077, 1.442695
        %v1100 = vpow.pop %v1099
        %v1101 = vmul.f32 %v1078, 1.442695
        %v1102 = vpow.pop %v1101
        %v1103 = vmul.f32 %v1079, 1.442695
        %v1104 = vpow.pop %v1103
        %v1105 = vmul.f32 %v1080, 1.442695
        %v1106 = vpow.pop %v1105
        %v1107 = vmul.f32 %v1081, 1.442695
        %v1108 = vpow.pop %v1107
        %v1109 = vmul.f32 %v1082, 1.442695
        %v1110 = vpow.pop %v1109
        %v1111 = vmul.f32 %v1083, 1.442695
        %v1112 = vpow.pop %v1111
        %v1113 = vmul.f32 %v1084, 1.442695
        %v1114 = vpow.pop %v1113
        %v1115 = vmul.f32 %v1085, 1.442695
        %v1116 = vpow.pop %v1115
        %v1117 = vmul.f32 %v1086, 1.442695
        %v1118 = vpow.pop %v1117
        %v1119 = vpack.c.bf16 %v1090, %v1088
        %v1120 = vpack.c.bf16 %v1094, %v1092
        %v1121 = vpack.c.bf16 %v1098, %v1096
        %v1122 = vpack.c.bf16 %v1102, %v1100
        %v1123 = vpack.c.bf16 %v1106, %v1104
        %v1124 = vpack.c.bf16 %v1110, %v1108
        %v1125 = vpack.c.bf16 %v1114, %v1112
        %v1126 = vpack.c.bf16 %v1118, %v1116
        %v1127 = vld [vmem:[#allocation7] sm:$0xff]
        %v1128 = vld [vmem:[#allocation7 + $0x8] sm:$0xff]
        %v1129 = vld [vmem:[#allocation7 + $0x10] sm:$0xff]
        %v1130 = vld [vmem:[#allocation7 + $0x18] sm:$0xff]
        %v1131 = vld [vmem:[#allocation7 + $0x20] sm:$0xff]
        %v1132 = vld [vmem:[#allocation7 + $0x28] sm:$0xff]
        %v1134 = vlaneseq
        %v1135 = vshrl.u32 %v1134, 7
        %v1136 = vsub.s32 0, %v1135
        %v1137 = vrot.slane %v1064, %v1136
        %v1139 = vmul.f32 %v1137, %v1127
        %v1140 = vmul.f32 %v1137, %v1128
        %v1141 = vmul.f32 %v1137, %v1129
        %v1142 = vmul.f32 %v1137, %v1130
        %v1143 = vmul.f32 %v1137, %v1131
        %v1144 = vmul.f32 %v1137, %v1132
        %1145 = vmatprep.subr.bf16.mxu0 0
        %1146 = vmatpush1.bf16.msra.mxu0 %v1119
        %1147 = vmatprep.subr.bf16.mxu0 0
        %1148 = vmatpush1.bf16.msra.mxu0 %v1120
        %1149 = vmatprep.subr.bf16.mxu0 0
        %1150 = vmatpush1.bf16.msra.mxu0 %v1121
        %1151 = vmatprep.subr.bf16.mxu0 0
        %1152 = vmatpush1.bf16.msra.mxu0 %v1122
        %1153 = vmatprep.subr.bf16.mxu0 0
        %1154 = vmatpush1.bf16.msra.mxu0 %v1123
        %1155 = vmatprep.subr.bf16.mxu0 0
        %1156 = vmatpush1.bf16.msra.mxu0 %v1124
        %1157 = vmatprep.subr.bf16.mxu0 0
        %1158 = vmatpush1.bf16.msra.mxu0 %v1125
        %1159 = vmatprep.subr.bf16.mxu0 0
        %1160 = vmatpush1.bf16.msra.mxu0 %v1126
        %1161 = vmatprep.subr.bf16.mxu0 0
        %1162 = vmatpush1.bf16.msra.mxu0 0
        %1163 = vmatprep.subr.bf16.mxu0 0
        %1164 = vmatpush1.bf16.msra.mxu0 0
        %1165 = vmatprep.subr.bf16.mxu0 0
        %1166 = vmatpush1.bf16.msra.mxu0 0
        %1167 = vmatprep.subr.bf16.mxu0 0
        %1168 = vmatpush1.bf16.msra.mxu0 0
        %1169 = vmatprep.subr.bf16.mxu0 0
        %1170 = vmatpush1.bf16.msra.mxu0 0
        %1171 = vmatprep.subr.bf16.mxu0 0
        %1172 = vmatpush1.bf16.msra.mxu0 0
        %1173 = vmatprep.subr.bf16.mxu0 0
        %1174 = vmatpush1.bf16.msra.mxu0 0
        %1175 = vmatprep.subr.bf16.mxu0 0
        %1176 = vmatpush1.bf16.msra.mxu0 0
        %1177 = vmatprep.mubr.bf16.mxu0 0
        %1178 = vmatmul.mubr.bf16.gmra.mrb[0].mxu0 %v897
        %v1179 = vpop.f32.mrb[0].mxu0
        %v1180 = vadd.f32 0.0, %v1179
        %v1181 = vpop.f32.mrb[0].mxu0
        %v1182 = vpop.f32.mrb[0].mxu0
        %v1183 = vadd.f32 0.0, %v1182
        %v1184 = vpop.f32.mrb[0].mxu0
        %1185 = vmatprep.mubr.bf16.mxu0 0
        %1186 = vmatmul.mubr.bf16.gmra.mrb[0].mxu0 %v898
        %v1187 = vpop.f32.mrb[0].mxu0
        %v1188 = vadd.f32 0.0, %v1187
        %v1189 = vpop.f32.mrb[0].mxu0
        %v1190 = vpop.f32.mrb[0].mxu0
        %v1191 = vadd.f32 0.0, %v1190
        %v1192 = vpop.f32.mrb[0].mxu0
        %1193 = vmatprep.mubr.bf16.mxu0 0
        %1194 = vmatmul.mubr.bf16.gmra.mrb[0].mxu0 %v899
        %v1195 = vpop.f32.mrb[0].mxu0
        %v1196 = vadd.f32 0.0, %v1195
        %v1197 = vpop.f32.mrb[0].mxu0
        %v1198 = vpop.f32.mrb[0].mxu0
        %v1199 = vadd.f32 0.0, %v1198
        %v1200 = vpop.f32.mrb[0].mxu0
        %1201 = vdwg.mxu0
        %v1202 = vadd.f32 %v1139, %v1180
        %v1203 = vadd.f32 %v1140, %v1183
        %v1204 = vadd.f32 %v1141, %v1188
        %v1205 = vadd.f32 %v1142, %v1191
        %v1206 = vadd.f32 %v1143, %v1196
        %v1207 = vadd.f32 %v1144, %v1199
        %1208 = vst [vmem:[#allocation7] sm:$0xff] %v1202
        %1209 = vst [vmem:[#allocation7 + $0x8] sm:$0xff] %v1203
        %1210 = vst [vmem:[#allocation7 + $0x10] sm:$0xff] %v1204
        %1211 = vst [vmem:[#allocation7 + $0x18] sm:$0xff] %v1205
        %1212 = vst [vmem:[#allocation7 + $0x20] sm:$0xff] %v1206
        %1213 = vst [vmem:[#allocation7 + $0x28] sm:$0xff] %v1207
        %1214 = vst [vmem:[#allocation6] sm:$0x1] %v1061
        %p1215 = scmp.eq.s32.totalorder %s29, 1
        // Predicated region
        $region145: #{concat_head_with_cross_attention.1} parent=127 // pred_check
          %p1216 = pneg %p1215
        $region146: #{concat_head_with_cross_attention.1} parent=127 // pred_check_branch
          %1218 = sbr.rel (%p1216) target = $region148
        $region147: #{concat_head_with_cross_attention.1} parent=127 // pred_region
          %v1219 = vld [vmem:[#allocation7 + $0x20] sm:$0x1]
          %v1220 = vrcp.pop %v1219
          %v1221 = vld [vmem:[#allocation7] sm:$0xff]
          %v1222 = vld [vmem:[#allocation7 + $0x8] sm:$0xff]
          %v1223 = vld [vmem:[#allocation7 + $0x10] sm:$0xff]
          %v1224 = vld [vmem:[#allocation7 + $0x18] sm:$0xff]
          %v1225 = vlaneseq
          %v1226 = vshrl.u32 %v1225, 7
          %v1227 = vsub.s32 0, %v1226
          %v1228 = vrot.slane %v1220, %v1227
          %v1229 = vmul.f32 %v1221, %v1228
          %v1230 = vmul.f32 %v1222, %v1228
          %v1231 = vmul.f32 %v1223, %v1228
          %v1232 = vmul.f32 %v1224, %v1228
          %s1233 = smul.u32 %s28, 128
          %s1234 = sshra.s32 %s1233, 7
          %s1235 = sand.u32 %s1233, 127
          %s1236 = smul.addr %s1234, 8
          %s1237 = scalar_lea.vmem [#allocation2], %s1236
          %v1238 = vld [vmem:[%s1237] sm:$0xff]
          %v1239 = vld [vmem:[%s1237 + $0x10] sm:$0xff]
          %v1240 = vld [vmem:[%s1237 + $0x20] sm:$0xff]
          %v1241 = vld [vmem:[%s1237 + $0x30] sm:$0xff]
          %s1242 = sld [smem:[#allocation8]]
          %v1243 = vstv %s1242
          %v1244 = vmul.f32 %v1243, %v1229
          %v1245 = vmul.f32 %v1243, %v1230
          %v1246 = vmul.f32 %v1243, %v1231
          %v1247 = vmul.f32 %v1243, %v1232
          %v1248 = vadd.f32 %v1244, %v1238
          %v1249 = vadd.f32 %v1245, %v1239
          %v1250 = vadd.f32 %v1246, %v1240
          %v1251 = vadd.f32 %v1247, %v1241
          %v1252 = vmax.f32 %v1248, 0.0
          %v1253 = vmax.f32 %v1249, 0.0
          %v1254 = vmax.f32 %v1250, 0.0
          %v1255 = vmax.f32 %v1251, 0.0
          %v1256 = vld [vmem:[%s6] sm:$0xf]
          %v1257 = vld [vmem:[%s6 + $0x4] sm:$0xf]
          %v1258 = vld [vmem:[%s6 + $0x8] sm:$0xf]
          %v1259 = vld [vmem:[%s6 + $0xc] sm:$0xf]
          %v1260 = vpack.c.bf16 %v1253, %v1252
          %v1261 = vpack.c.bf16 %v1255, %v1254
          %v1262 = vld [vmem:[%s8 + $0x70] sm:$0xff]
          %v1263 = vld [vmem:[%s8 + $0x78] sm:$0xff]
          %v1264 = vld [vmem:[%s8 + $0x80] sm:$0xff]
          %v1265 = vld [vmem:[%s8 + $0x88] sm:$0xff]
          %1267 = vset.pattern.permute.xlu0 0
          %1268 = vperm.xlu0 %1267, %v1262
          %v1269 = vpop.permute.xlu0 %1268
          %1272 = vset.pattern.permute.xlu0 0
          %1273 = vperm.xlu0 %1272, %v1263
          %v1274 = vpop.permute.xlu0 %1273
          %1277 = vset.pattern.permute.xlu0 0
          %1278 = vperm.xlu0 %1277, %v1264
          %v1279 = vpop.permute.xlu0 %1278
          %1282 = vset.pattern.permute.xlu0 0
          %1283 = vperm.xlu0 %1282, %v1265
          %v1284 = vpop.permute.xlu0 %1283
          %v1290 = vunpack.c.l.b16 %v1256
          %v1291 = vunpack.c.l.b16 %v1257
          %v1292 = vunpack.c.l.b16 %v1258
          %v1293 = vunpack.c.l.b16 %v1259
          %v1294 = vpack.c.b16 %v1291, %v1290
          %v1295 = vpack.c.b16 %v1293, %v1292
          %vm1296 = vcmask 261120
          %v1298 = vsel %vm1296, %v1294, 0
          %v1301 = vsel %vm1296, %v1295, 0
          %1303 = vmatprep.subr.bf16.mxu0 0
          %1304 = vmatpush1.bf16.msra.mxu0 %v1260
          %1305 = vmatprep.subr.bf16.mxu0 0
          %1306 = vmatpush1.bf16.msra.mxu0 %v1261
          %1307 = vmatprep.subr.bf16.mxu0 0
          %1308 = vmatpush1.bf16.msra.mxu0 0
          %1309 = vmatprep.subr.bf16.mxu0 0
          %1310 = vmatpush1.bf16.msra.mxu0 0
          %1311 = vmatprep.subr.bf16.mxu0 0
          %1312 = vmatpush1.bf16.msra.mxu0 0
          %1313 = vmatprep.subr.bf16.mxu0 0
          %1314 = vmatpush1.bf16.msra.mxu0 0
          %1315 = vmatprep.subr.bf16.mxu0 0
          %1316 = vmatpush1.bf16.msra.mxu0 0
          %1317 = vmatprep.subr.bf16.mxu0 0
          %1318 = vmatpush1.bf16.msra.mxu0 0
          %1319 = vmatprep.subr.bf16.mxu0 0
          %1320 = vmatpush1.bf16.msra.mxu0 0
          %1321 = vmatprep.subr.bf16.mxu0 0
          %1322 = vmatpush1.bf16.msra.mxu0 0
          %1323 = vmatprep.subr.bf16.mxu0 0
          %1324 = vmatpush1.bf16.msra.mxu0 0
          %1325 = vmatprep.subr.bf16.mxu0 0
          %1326 = vmatpush1.bf16.msra.mxu0 0
          %1327 = vmatprep.subr.bf16.mxu0 0
          %1328 = vmatpush1.bf16.msra.mxu0 0
          %1329 = vmatprep.subr.bf16.mxu0 0
          %1330 = vmatpush1.bf16.msra.mxu0 0
          %1331 = vmatprep.subr.bf16.mxu0 0
          %1332 = vmatpush1.bf16.msra.mxu0 0
          %1333 = vmatprep.subr.bf16.mxu0 0
          %1334 = vmatpush1.bf16.msra.mxu0 0
          %1335 = vmatprep.mubr.bf16.mxu0 0
          %1336 = vmatmul.mubr.bf16.gmra.mrb[0].mxu0 %v1298
          %v1337 = vpop.f32.mrb[0].mxu0
          %v1338 = vadd.f32 %v1269, %v1337
          %v1339 = vpop.f32.mrb[0].mxu0
          %v1340 = vpop.f32.mrb[0].mxu0
          %v1341 = vadd.f32 %v1274, %v1340
          %v1342 = vpop.f32.mrb[0].mxu0
          %1343 = vmatprep.mubr.bf16.mxu0 0
          %1344 = vmatmul.mubr.bf16.gmra.mrb[0].mxu0 %v1301
          %v1345 = vpop.f32.mrb[0].mxu0
          %v1346 = vadd.f32 %v1279, %v1345
          %v1347 = vpop.f32.mrb[0].mxu0
          %v1348 = vpop.f32.mrb[0].mxu0
          %v1349 = vadd.f32 %v1284, %v1348
          %v1350 = vpop.f32.mrb[0].mxu0
          %1351 = vdwg.mxu0
          %v1352 = vmax.f32 %v1338, 0.0
          %v1353 = vmax.f32 %v1341, 0.0
          %v1354 = vmax.f32 %v1346, 0.0
          %v1355 = vmax.f32 %v1349, 0.0
          %v1356 = vld [vmem:[%s7] sm:$0xf]
          %v1357 = vld [vmem:[%s7 + $0x4] sm:$0xf]
          %v1358 = vld [vmem:[%s7 + $0x8] sm:$0xf]
          %v1359 = vld [vmem:[%s7 + $0xc] sm:$0xf]
          %v1360 = vpack.c.bf16 %v1353, %v1352
          %v1361 = vpack.c.bf16 %v1355, %v1354
          %v1362 = vld [vmem:[%s8 + $0x90] sm:$0xff]
          %v1363 = vld [vmem:[%s8 + $0x98] sm:$0xff]
          %v1364 = vld [vmem:[%s8 + $0xa0] sm:$0xff]
          %v1365 = vld [vmem:[%s8 + $0xa8] sm:$0xff]
          %1367 = vset.pattern.permute.xlu0 0
          %1368 = vperm.xlu0 %1367, %v1362
          %v1369 = vpop.permute.xlu0 %1368
          %1372 = vset.pattern.permute.xlu0 0
          %1373 = vperm.xlu0 %1372, %v1363
          %v1374 = vpop.permute.xlu0 %1373
          %1377 = vset.pattern.permute.xlu0 0
          %1378 = vperm.xlu0 %1377, %v1364
          %v1379 = vpop.permute.xlu0 %1378
          %1382 = vset.pattern.permute.xlu0 0
          %1383 = vperm.xlu0 %1382, %v1365
          %v1384 = vpop.permute.xlu0 %1383
          %v1390 = vunpack.c.l.b16 %v1356
          %v1391 = vunpack.c.l.b16 %v1357
          %v1392 = vunpack.c.l.b16 %v1358
          %v1393 = vunpack.c.l.b16 %v1359
          %v1394 = vpack.c.b16 %v1391, %v1390
          %v1395 = vpack.c.b16 %v1393, %v1392
          %v1397 = vsel %vm1296, %v1394, 0
          %v1400 = vsel %vm1296, %v1395, 0
          %1402 = vmatprep.subr.bf16.mxu0 0
          %1403 = vmatpush1.bf16.msra.mxu0 %v1360
          %1404 = vmatprep.subr.bf16.mxu0 0
          %1405 = vmatpush1.bf16.msra.mxu0 %v1361
          %1406 = vmatprep.subr.bf16.mxu0 0
          %1407 = vmatpush1.bf16.msra.mxu0 0
          %1408 = vmatprep.subr.bf16.mxu0 0
          %1409 = vmatpush1.bf16.msra.mxu0 0
          %1410 = vmatprep.subr.bf16.mxu0 0
          %1411 = vmatpush1.bf16.msra.mxu0 0
          %1412 = vmatprep.subr.bf16.mxu0 0
          %1413 = vmatpush1.bf16.msra.mxu0 0
          %1414 = vmatprep.subr.bf16.mxu0 0
          %1415 = vmatpush1.bf16.msra.mxu0 0
          %1416 = vmatprep.subr.bf16.mxu0 0
          %1417 = vmatpush1.bf16.msra.mxu0 0
          %1418 = vmatprep.subr.bf16.mxu0 0
          %1419 = vmatpush1.bf16.msra.mxu0 0
          %1420 = vmatprep.subr.bf16.mxu0 0
          %1421 = vmatpush1.bf16.msra.mxu0 0
          %1422 = vmatprep.subr.bf16.mxu0 0
          %1423 = vmatpush1.bf16.msra.mxu0 0
          %1424 = vmatprep.subr.bf16.mxu0 0
          %1425 = vmatpush1.bf16.msra.mxu0 0
          %1426 = vmatprep.subr.bf16.mxu0 0
          %1427 = vmatpush1.bf16.msra.mxu0 0
          %1428 = vmatprep.subr.bf16.mxu0 0
          %1429 = vmatpush1.bf16.msra.mxu0 0
          %1430 = vmatprep.subr.bf16.mxu0 0
          %1431 = vmatpush1.bf16.msra.mxu0 0
          %1432 = vmatprep.subr.bf16.mxu0 0
          %1433 = vmatpush1.bf16.msra.mxu0 0
          %1434 = vmatprep.mubr.bf16.mxu0 0
          %1435 = vmatmul.mubr.bf16.gmra.mrb[0].mxu0 %v1397
          %v1436 = vpop.f32.mrb[0].mxu0
          %v1437 = vadd.f32 %v1369, %v1436
          %v1438 = vpop.f32.mrb[0].mxu0
          %v1439 = vpop.f32.mrb[0].mxu0
          %v1440 = vadd.f32 %v1374, %v1439
          %v1441 = vpop.f32.mrb[0].mxu0
          %1442 = vmatprep.mubr.bf16.mxu0 0
          %1443 = vmatmul.mubr.bf16.gmra.mrb[0].mxu0 %v1400
          %v1444 = vpop.f32.mrb[0].mxu0
          %v1445 = vadd.f32 %v1379, %v1444
          %v1446 = vpop.f32.mrb[0].mxu0
          %v1447 = vpop.f32.mrb[0].mxu0
          %v1448 = vadd.f32 %v1384, %v1447
          %v1449 = vpop.f32.mrb[0].mxu0
          %1450 = vdwg.mxu0
          %v1451 = vmax.f32 %v1437, 0.0
          %v1452 = vmax.f32 %v1440, 0.0
          %v1453 = vmax.f32 %v1445, 0.0
          %v1454 = vmax.f32 %v1448, 0.0
          %1455 = vst [vmem:[%s493] sm:$0xff] %v1451
          %1456 = vst [vmem:[%s493 + $0x8] sm:$0xff] %v1452
          %1457 = vst [vmem:[%s493 + $0x10] sm:$0xff] %v1453
          %1458 = vst [vmem:[%s493 + $0x18] sm:$0xff] %v1454
        $region148: #{concat_head_with_cross_attention.1} parent=127 // pred_fallthru
          _
        %s1459 = sand.u32 %s279, 1
        %s1460 = sand.u32 %s279, 1
        %s1461 = smul.addr %s1460, 32
        %s1462 = scalar_lea.vmem [#allocation11], %s1461
        // Predicated region
        $region149: #{concat_head_with_cross_attention.1} parent=127 // pred_check
          %p1463 = pneg %p289
        $region150: #{concat_head_with_cross_attention.1} parent=127 // pred_check_branch
          %1465 = sbr.rel (%p1463) target = $region152
        $region151: #{concat_head_with_cross_attention.1} parent=127 // pred_region
          %s1466 = smul.addr %s27, 8
          %s1467 = sadd.s32 %s28, %s1466
          %s1468 = smul.addr %s1467, 8
          %s1469 = scalar_lea.vmem %s10, %s1468
          // Predicated region
          $region153: #{concat_head_with_cross_attention.1} parent=151 // pred_check
            _
          $region154: #{concat_head_with_cross_attention.1} parent=151 // pred_check_branch
            %1471 = sbr.rel (0) target = $region156
          $region155: #{concat_head_with_cross_attention.1} parent=151 // pred_region
            // Predicated region
            $region157: #{concat_head_with_cross_attention.1} parent=155 // pred_check
              _
            $region158: #{concat_head_with_cross_attention.1} parent=155 // pred_check_branch
              %1473 = sbr.rel (0) target = $region160
            $region159: #{concat_head_with_cross_attention.1} parent=155 // pred_region
              // Predicated region
              $region172: #{concat_head_with_cross_attention.1} parent=159 // pred_check
                _
              $region173: #{concat_head_with_cross_attention.1} parent=159 // pred_check_branch
                %1494 = sbr.rel (0) target = $region175
              $region174: #{concat_head_with_cross_attention.1} parent=159 // pred_region
                loop: start=0, step=1, limit=1
                $region176: #{concat_head_with_cross_attention.1} parent=174 // loop_pre_header
                  _
                $region177: #{concat_head_with_cross_attention.1} parent=174 // loop_header
                  %s1496 = sphi 0, %s1500
                  %p1497 = scmp.ge.s32.totalorder %s1496, 1
                  %s1501 = sphi %s1462, %s1462
                  %s1502 = sphi %s1469, %s1469
                $region178: #{concat_head_with_cross_attention.1} parent=174 // loop_header_branch
                  %1499 = sbr.rel (%p1497) target = $region182
                $region179: #{concat_head_with_cross_attention.1} parent=174 // loop_body
                  %v1503 = vld [vmem:[%s1501] sm:$0xff]
                  %1504 = vst [vmem:[%s1502] sm:$0xff] %v1503
                  %v1505 = vld [vmem:[%s1501 + $0x8] sm:$0xff]
                  %1506 = vst [vmem:[%s1502 + $0x10] sm:$0xff] %v1505
                  %v1507 = vld [vmem:[%s1501 + $0x10] sm:$0xff]
                  %1508 = vst [vmem:[%s1502 + $0x20] sm:$0xff] %v1507
                  %v1509 = vld [vmem:[%s1501 + $0x18] sm:$0xff]
                  %1510 = vst [vmem:[%s1502 + $0x30] sm:$0xff] %v1509
                $region180: #{concat_head_with_cross_attention.1} parent=174 // loop_footer
                  %s1500 = sadd.s32 1, %s1496
                $region181: #{concat_head_with_cross_attention.1} parent=174 // loop_footer_branch
                  %1495 = sbr.rel target = $region177
                $region182: #{concat_head_with_cross_attention.1} parent=174 // loop_exit
                  _
              $region175: #{concat_head_with_cross_attention.1} parent=159 // pred_fallthru
                _
              // Predicated region
              $region183: #{concat_head_with_cross_attention.1} parent=159 // pred_check
                _
              $region184: #{concat_head_with_cross_attention.1} parent=159 // pred_check_branch
                %1512 = sbr.rel target = $region186
              $region185: #{concat_head_with_cross_attention.1} parent=159 // pred_region
                _
              $region186: #{concat_head_with_cross_attention.1} parent=159 // pred_fallthru
                _
            $region160: #{concat_head_with_cross_attention.1} parent=155 // pred_fallthru
              _
            // Predicated region
            $region161: #{concat_head_with_cross_attention.1} parent=155 // pred_check
              _
            $region162: #{concat_head_with_cross_attention.1} parent=155 // pred_check_branch
              %1475 = sbr.rel target = $region164
            $region163: #{concat_head_with_cross_attention.1} parent=155 // pred_region
              loop: start=0, step=1, limit=1
              $region165: #{concat_head_with_cross_attention.1} parent=163 // loop_pre_header
                _
              $region166: #{concat_head_with_cross_attention.1} parent=163 // loop_header
                %s1478 = sphi 0, %s1482
                %p1479 = scmp.ge.s32.totalorder %s1478, 1
                %s1483 = sphi %s1462, %s1462
                %s1484 = sphi %s1469, %s1469
              $region167: #{concat_head_with_cross_attention.1} parent=163 // loop_header_branch
                %1481 = sbr.rel (%p1479) target = $region171
              $region168: #{concat_head_with_cross_attention.1} parent=163 // loop_body
                %v1485 = vld [vmem:[%s1483] sm:$0xff]
                %1486 = vst [vmem:[%s1484] sm:$0xff] %v1485
                %v1487 = vld [vmem:[%s1483 + $0x8] sm:$0xff]
                %1488 = vst [vmem:[%s1484 + $0x10] sm:$0xff] %v1487
                %v1489 = vld [vmem:[%s1483 + $0x10] sm:$0xff]
                %1490 = vst [vmem:[%s1484 + $0x20] sm:$0xff] %v1489
                %v1491 = vld [vmem:[%s1483 + $0x18] sm:$0xff]
                %1492 = vst [vmem:[%s1484 + $0x30] sm:$0xff] %v1491
              $region169: #{concat_head_with_cross_attention.1} parent=163 // loop_footer
                %s1482 = sadd.s32 1, %s1478
              $region170: #{concat_head_with_cross_attention.1} parent=163 // loop_footer_branch
                %1477 = sbr.rel target = $region166
              $region171: #{concat_head_with_cross_attention.1} parent=163 // loop_exit
                _
            $region164: #{concat_head_with_cross_attention.1} parent=155 // pred_fallthru
              _
          $region156: #{concat_head_with_cross_attention.1} parent=151 // pred_fallthru
            _
          %1513 = vnop
        $region152: #{concat_head_with_cross_attention.1} parent=127 // pred_fallthru
          _
      $region128: #{concat_head_with_cross_attention.1} parent=5 // pred_fallthru
        _
      %p1514 = scmp.le.s32.totalorder 2, %s17
      // Predicated region
      $region187: #{concat_head_with_cross_attention.1} parent=5 // pred_check
        %p1515 = pneg %p1514
      $region188: #{concat_head_with_cross_attention.1} parent=5 // pred_check_branch
        %1517 = sbr.rel (%p1515) target = $region190
      $region189: #{concat_head_with_cross_attention.1} parent=5 // pred_region
        %s1518 = ssub.s32 %s17, 2
        // Predicated region
        $region191: #{concat_head_with_cross_attention.1} parent=189 // pred_check
          %p1519 = pneg %p295
        $region192: #{concat_head_with_cross_attention.1} parent=189 // pred_check_branch
          %1521 = sbr.rel (%p1519) target = $region194
        $region193: #{concat_head_with_cross_attention.1} parent=189 // pred_region
          %s1522 = sand.u32 %s280, 1
          %s1523 = sand.u32 %s280, 1
          %s1524 = smul.addr %s1523, 32
          %s1525 = scalar_lea.vmem [#allocation11], %s1524
        $region194: #{concat_head_with_cross_attention.1} parent=189 // pred_fallthru
          _
      $region190: #{concat_head_with_cross_attention.1} parent=5 // pred_fallthru
        _
    $region6: #{concat_head_with_cross_attention.1} parent=1 // loop_footer
      %s21 = sadd.s32 1, %s17
    $region7: #{concat_head_with_cross_attention.1} parent=1 // loop_footer_branch
      %16 = sbr.rel target = $region3
    $region8: #{concat_head_with_cross_attention.1} parent=1 // loop_exit
      _

</llo_original>
